<compile_context>
chip_gen: v6e
topology: v6e:2x2x1
jax: 0.10.0
libtpu: 0.0.40
codegen_flags: <defaults>
</compile_context>

<pallas_src>
import functools

import jax
import jax.numpy as jnp
from jax import lax
from jax.experimental import pallas as pl
from jax.experimental.pallas import tpu as pltpu


def _round_up(v, m):
    return ((v + m - 1) // m) * m


_UNROLL_T_MAX = 16   # fully unroll the recurrence for short sequences


# ----------------------------- kernel ---------------------------------------

def _gru_step(gi, h, w_hh, b_hh, HP):
    """One GRU step with precomputed input projection gi = x_t @ W_ih + b_ih.

    PyTorch gate order (r, z, n); each gate occupies a 128-lane-aligned block of
    width HP, so every slice below is lane-tile aligned (no XLU shuffles).  The
    r/z sigmoids are fused into a single EUP pass over the contiguous
    (BP, 2*HP) block.  b_hh stays inside gh so the n-gate hidden bias is
    multiplied by r, exactly like nn.GRU.
    """
    gh = jnp.dot(h, w_hh, preferred_element_type=jnp.float32) + b_hh
    rz = jax.nn.sigmoid(gi[:, :2 * HP] + gh[:, :2 * HP])      # fused r|z sigmoid
    r = rz[:, :HP]
    z = rz[:, HP:]
    n = jnp.tanh(gi[:, 2 * HP:] + r * gh[:, 2 * HP:])
    return (1.0 - z) * n + z * h


def _bigru_kernel(x2_ref,     # (T*BP, FP) time-major input
                  w_ref,      # (FP+HP, 2*3HP) packed [W_ih_f|W_ih_b ; W_hh_f|W_hh_b]
                  b_ref,      # (8, WB) packed [b_ih_f, b_hh_f, b_ih_b, b_hh_b, fc_b, 0..]
                  fcw_ref,    # (2*HP, CP) stacked fc weight [fwd rows ; bwd rows]
                  out_ref,    # (BP, CP)
                  *, T, BP, FP, HP, CP):
    H3 = 3 * HP

    # ---- unpack packed operands with static, tile-aligned slices ------------
    wif = w_ref[0:FP, 0:H3]                 # forward  W_ih  (FP, 3HP)
    wib = w_ref[0:FP, H3:2 * H3]            # backward W_ih
    whf = w_ref[FP:FP + HP, 0:H3]           # forward  W_hh  (HP, 3HP)
    whb = w_ref[FP:FP + HP, H3:2 * H3]      # backward W_hh

    bif = b_ref[0:1, 0:H3]
    bhf = jnp.broadcast_to(b_ref[1:2, 0:H3], (BP, H3))   # hoisted broadcast
    bib = b_ref[2:3, 0:H3]
    bhb = jnp.broadcast_to(b_ref[3:4, 0:H3], (BP, H3))
    fcb = b_ref[4:5, 0:CP]

    x2 = x2_ref[...]                                      # f32 (T*BP, FP)

    # ---- hoisted forward input projection (b_ih folded in) ------------------
    # TODO(synk): at scale cast x2 / weights to bf16 (preferred_element_type
    # stays f32) for the v6e/v7x MXU fast path; kept f32 here to preserve the
    # module's f32 numerics at 1e-4 tolerance.
    gi_all = jnp.dot(x2, wif, preferred_element_type=jnp.float32) + bif   # (T*BP, 3HP)

    # ---- forward recurrence --------------------------------------------------
    # TODO(synk): hold W_hh weight-stationary across steps (pltpu.matmul_push_rhs
    # / matmul_acc_lhs / matmul_pop) and/or pack the 3 gates into one 128-lane
    # block (offsets 0/32/64) to shrink per-step MXU/EUP work; both need a
    # bundle dump to verify no relayout, so deferred from this revision.
    h0 = jnp.zeros((BP, HP), jnp.float32)
    if T <= _UNROLL_T_MAX:
        h = h0
        for t in range(T):            # static unroll: full LLO scheduling visibility
            gi_t = lax.slice(gi_all, (t * BP, 0), ((t + 1) * BP, H3))
            h = _gru_step(gi_t, h, whf, bhf, HP)
    else:
        def body(t, h_c):
            gi_t = lax.dynamic_slice(gi_all, (t * BP, 0), (BP, H3))
            return _gru_step(gi_t, h_c, whf, bhf, HP)
        h = lax.fori_loop(0, T, body, h0, unroll=4)

    # ---- backward half of out[:, -1, :]: one cell step on x_{T-1}, h0 = 0 ----
    x_last = lax.slice(x2, ((T - 1) * BP, 0), (T * BP, FP))
    gi_b = jnp.dot(x_last, wib, preferred_element_type=jnp.float32) + bib
    h_b = _gru_step(gi_b, jnp.zeros((BP, HP), jnp.float32), whb, bhb, HP)

    # ---- fused fc head: single (BP, 2HP) @ (2HP, CP) MXU pass ----------------
    hcat = jnp.concatenate([h, h_b], axis=-1)             # lane concat at 128 boundary
    logits = jnp.dot(hcat, fcw_ref[...], preferred_element_type=jnp.float32) + fcb
    out_ref[...] = logits.astype(out_ref.dtype)           # lane-dense (BP, CP) store


# ----------------------------- wrapper ---------------------------------------

def _pad_gate_cols(w, H, HP):
    """(..., 3H) -> (..., 3HP): each of the 3 gate blocks zero-padded on lanes."""
    parts = []
    for g in range(3):
        blk = w[..., g * H:(g + 1) * H]
        pad = [(0, 0)] * (w.ndim - 1) + [(0, HP - H)]
        parts.append(jnp.pad(blk, pad))
    return jnp.concatenate(parts, axis=-1)


def bigru_forward(x_btf, params):
    """x_btf: (B, T, F) float32, like the PyTorch module's input."""
    B, T, F = x_btf.shape
    H = params["w_hh_f"].shape[0]
    C = params["fc_w"].shape[1]

    BP = _round_up(B, 8)      # sublane-align the batch
    FP = _round_up(F, 8)      # sublane-align features (stacked weight rows)
    HP = _round_up(H, 128)    # lane-align each gate block
    CP = _round_up(C, 128)    # lane-dense output store
    H3 = 3 * HP
    WB = max(H3, CP)          # bias-slab lane width

    # (B,T,F) -> time-major, zero-padded, flattened to (T*BP, FP).
    # TODO(synk): at production T*B*F, read (B, Tc, F) chunks of the batch-major
    # input directly in-kernel (BlockSpec index_map / manual double-buffered DMA)
    # instead of this wrapper-side transpose+pad, stream the recurrence over time
    # chunks (h carried in VMEM scratch) to fit v7x's 64 MiB VMEM, and add a
    # batch-parallel grid axis for v7x's 2 TensorCores when B is large.
    x_tbf = jnp.transpose(x_btf, (1, 0, 2)).astype(jnp.float32)
    x_tbf = jnp.pad(x_tbf, ((0, 0), (0, BP - B), (0, FP - F)))
    x2 = x_tbf.reshape(T * BP, FP)

    def pad_w_ih(w):   # (F, 3H) -> (FP, 3HP)
        return jnp.pad(_pad_gate_cols(w, H, HP), ((0, FP - F), (0, 0)))

    def pad_w_hh(w):   # (H, 3H) -> (HP, 3HP)
        return jnp.pad(_pad_gate_cols(w, H, HP), ((0, HP - H), (0, 0)))

    def pad_b(b):      # (1, 3H) -> (1, WB)
        return jnp.pad(_pad_gate_cols(b, H, HP), ((0, 0), (0, WB - H3)))

    # ---- pack 12 tiny operands into 4 (cuts fixed DMA-issue overhead) -------
    w_all = jnp.concatenate(
        [jnp.concatenate([pad_w_ih(params["w_ih_f"]),
                          pad_w_ih(params["w_ih_b"])], axis=1),
         jnp.concatenate([pad_w_hh(params["w_hh_f"]),
                          pad_w_hh(params["w_hh_b"])], axis=1)],
        axis=0)                                                 # (FP+HP, 2*3HP)

    fc_b_row = jnp.pad(params["fc_b"], ((0, 0), (0, WB - C)))   # (1, WB)
    b_all = jnp.concatenate(
        [pad_b(params["b_ih_f"]), pad_b(params["b_hh_f"]),
         pad_b(params["b_ih_b"]), pad_b(params["b_hh_b"]),
         fc_b_row, jnp.zeros((3, WB), jnp.float32)], axis=0)    # (8, WB)

    fc_w = params["fc_w"]                                       # (2H, C)
    fcw_all = jnp.concatenate(
        [jnp.pad(fc_w[:H], ((0, HP - H), (0, CP - C))),
         jnp.pad(fc_w[H:], ((0, HP - H), (0, CP - C)))], axis=0)  # (2HP, CP)

    args = (x2, w_all, b_all, fcw_all)

    flops = (2 * T * BP * FP * H3                 # hoisted forward input projection
             + 2 * T * BP * HP * H3               # forward recurrence
             + 2 * BP * FP * H3 + 2 * BP * HP * H3  # backward single step
             + 2 * BP * 2 * HP * CP)              # fused fc head
    transcendentals = 3 * (T + 1) * BP * HP
    bytes_accessed = 4 * (sum(int(a.size) for a in args) + BP * CP)

    out = pl.pallas_call(
        functools.partial(_bigru_kernel, T=T, BP=BP, FP=FP, HP=HP, CP=CP),
        out_shape=jax.ShapeDtypeStruct((BP, CP), jnp.float32),
        in_specs=[pl.BlockSpec(memory_space=pltpu.MemorySpace.VMEM) for _ in args],
        out_specs=pl.BlockSpec(memory_space=pltpu.MemorySpace.VMEM),
        compiler_params=pltpu.CompilerParams(vmem_limit_bytes=32 * 1024 * 1024),
        cost_estimate=pl.CostEstimate(flops=flops,
                                      transcendentals=transcendentals,
                                      bytes_accessed=bytes_accessed),
    )(*args)
    return out[:B, :C]


# ----------------------------- init & reference ------------------------------

def init_params(key, F, H, C):
    """Deterministic init matching PyTorch shapes (weights stored pre-transposed)."""
    ks = jax.random.split(key, 12)
    s_gru = 1.0 / (H ** 0.5)
    s_fc = 1.0 / ((2 * H) ** 0.5)

    def u(k, shape, s):
        return jax.random.uniform(k, shape, jnp.float32, -s, s)

    return {
        # forward direction: W_ih (3H, F) -> stored (F, 3H); W_hh (3H, H) -> (H, 3H)
        "w_ih_f": u(ks[0], (F, 3 * H), s_gru),
        "w_hh_f": u(ks[1], (H, 3 * H), s_gru),
        "b_ih_f": u(ks[2], (1, 3 * H), s_gru),
        "b_hh_f": u(ks[3], (1, 3 * H), s_gru),
        # backward direction
        "w_ih_b": u(ks[4], (F, 3 * H), s_gru),
        "w_hh_b": u(ks[5], (H, 3 * H), s_gru),
        "b_ih_b": u(ks[6], (1, 3 * H), s_gru),
        "b_hh_b": u(ks[7], (1, 3 * H), s_gru),
        # fc: Linear(2H, C): weight (C, 2H) -> stored (2H, C)
        "fc_w": u(ks[8], (2 * H, C), s_fc),
        "fc_b": u(ks[9], (1, C), s_fc),
    }


def _gru_cell_ref(x_t, h, w_ih_t, w_hh_t, b_ih, b_hh, H):
    """PyTorch nn.GRU cell math (unpadded), gate order (r, z, n)."""
    gi = jnp.dot(x_t, w_ih_t) + b_ih
    gh = jnp.dot(h, w_hh_t) + b_hh
    i_r, i_z, i_n = gi[:, 0:H], gi[:, H:2 * H], gi[:, 2 * H:3 * H]
    h_r, h_z, h_n = gh[:, 0:H], gh[:, H:2 * H], gh[:, 2 * H:3 * H]
    r = jax.nn.sigmoid(i_r + h_r)
    z = jax.nn.sigmoid(i_z + h_z)
    n = jnp.tanh(i_n + r * h_n)
    return (1.0 - z) * n + z * h


def reference_bigru(x_btf, params):
    """Pure-JAX faithful reference: full bidirectional GRU, last timestep, fc."""
    B, T, F = x_btf.shape
    H = params["w_hh_f"].shape[0]
    x_tbf = jnp.transpose(x_btf, (1, 0, 2)).astype(jnp.float32)

    def run_dir(xs, wih, whh, bih, bhh):
        def step(h, x_t):
            h_new = _gru_cell_ref(x_t, h, wih, whh, bih, bhh, H)
            return h_new, h_new
        _, hs = lax.scan(step, jnp.zeros((B, H), jnp.float32), xs)
        return hs                                          # (T, B, H)

    hs_f = run_dir(x_tbf,
                   params["w_ih_f"], params["w_hh_f"],
                   params["b_ih_f"], params["b_hh_f"])
    hs_b = run_dir(x_tbf[::-1],
                   params["w_ih_b"], params["w_hh_b"],
                   params["b_ih_b"], params["b_hh_b"])[::-1]
    last = jnp.concatenate([hs_f[-1], hs_b[-1]], axis=-1)  # (B, 2H)
    return last @ params["fc_w"] + params["fc_b"]


if __name__ == "__main__":
    B, T, F, H, C = 2, 8, 16, 32, 6
    key = jax.random.PRNGKey(0)
    kx, kp = jax.random.split(key)

    x = jax.random.normal(kx, (B, T, F), jnp.float32)
    params = init_params(kp, F, H, C)

    out = jax.block_until_ready(bigru_forward(x, params))
    ref = jax.block_until_ready(reference_bigru(x, params))

    assert out.shape == (B, C), out.shape
    assert jnp.allclose(out, ref, atol=1e-4, rtol=1e-4), (out, ref)
    print("KERNEL_OK")
</pallas_src>

<mosaic_0001>
module attributes {stable_mosaic.version = 11 : i64} {
  func.func @_bigru_kernel(%arg0: memref<64x16xf32, #tpu.memory_space<vmem>>, %arg1: memref<144x768xf32, #tpu.memory_space<vmem>>, %arg2: memref<8x384xf32, #tpu.memory_space<vmem>>, %arg3: memref<256x128xf32, #tpu.memory_space<vmem>>, %arg4: memref<8x128xf32, #tpu.memory_space<vmem>>) attributes {dimension_semantics = [], scalar_prefetch = 0 : i64, scratch_operands = 0 : i64, tpu.core_type = #tpu.core_type<tc>} {
    %c0 = arith.constant 0 : index
    %c0_0 = arith.constant 0 : index
    %0 = vector.load %arg1[%c0, %c0_0] : memref<144x768xf32, #tpu.memory_space<vmem>>, vector<16x384xf32>
    %c0_1 = arith.constant 0 : index
    %c384 = arith.constant 384 : index
    %1 = vector.load %arg1[%c0_1, %c384] : memref<144x768xf32, #tpu.memory_space<vmem>>, vector<16x384xf32>
    %c16 = arith.constant 16 : index
    %c0_2 = arith.constant 0 : index
    %2 = vector.load %arg1[%c16, %c0_2] : memref<144x768xf32, #tpu.memory_space<vmem>>, vector<128x384xf32>
    %c16_3 = arith.constant 16 : index
    %c384_4 = arith.constant 384 : index
    %3 = vector.load %arg1[%c16_3, %c384_4] : memref<144x768xf32, #tpu.memory_space<vmem>>, vector<128x384xf32>
    %c0_5 = arith.constant 0 : index
    %c0_6 = arith.constant 0 : index
    %4 = vector.load %arg2[%c0_5, %c0_6] : memref<8x384xf32, #tpu.memory_space<vmem>>, vector<1x384xf32>
    %c1 = arith.constant 1 : index
    %c0_7 = arith.constant 0 : index
    %5 = vector.load %arg2[%c1, %c0_7] : memref<8x384xf32, #tpu.memory_space<vmem>>, vector<1x384xf32>
    %6 = vector.shape_cast %5 : vector<1x384xf32> to vector<1x384xf32>
    %7 = vector.broadcast %6 : vector<1x384xf32> to vector<8x384xf32>
    %c2 = arith.constant 2 : index
    %c0_8 = arith.constant 0 : index
    %8 = vector.load %arg2[%c2, %c0_8] : memref<8x384xf32, #tpu.memory_space<vmem>>, vector<1x384xf32>
    %c3 = arith.constant 3 : index
    %c0_9 = arith.constant 0 : index
    %9 = vector.load %arg2[%c3, %c0_9] : memref<8x384xf32, #tpu.memory_space<vmem>>, vector<1x384xf32>
    %10 = vector.shape_cast %9 : vector<1x384xf32> to vector<1x384xf32>
    %11 = vector.broadcast %10 : vector<1x384xf32> to vector<8x384xf32>
    %c4 = arith.constant 4 : index
    %c0_10 = arith.constant 0 : index
    %12 = vector.load %arg2[%c4, %c0_10] : memref<8x384xf32, #tpu.memory_space<vmem>>, vector<1x128xf32>
    %c0_11 = arith.constant 0 : index
    %c0_12 = arith.constant 0 : index
    %13 = vector.load %arg0[%c0_11, %c0_12] : memref<64x16xf32, #tpu.memory_space<vmem>>, vector<64x16xf32>
    %cst = arith.constant dense<0.000000e+00> : vector<64x384xf32>
    %14 = tpu.matmul %13, %0, %cst {dimension_numbers = #tpu.dot_dimension_numbers<[1], [0], [0], [1], [0, 0, 1, 1], [], []>} : vector<64x16xf32>, vector<16x384xf32>, vector<64x384xf32> -> vector<64x384xf32>
    %15 = vector.broadcast %4 : vector<1x384xf32> to vector<64x384xf32>
    %16 = arith.addf %14, %15 : vector<64x384xf32>
    %cst_13 = arith.constant 0.000000e+00 : f32
    %17 = vector.broadcast %cst_13 : f32 to vector<8x128xf32>
    %18 = vector.extract_strided_slice %16 {offsets = [0, 0], sizes = [8, 384], strides = [1, 1]} : vector<64x384xf32> to vector<8x384xf32>
    %cst_14 = arith.constant dense<0.000000e+00> : vector<8x384xf32>
    %19 = tpu.matmul %17, %2, %cst_14 {dimension_numbers = #tpu.dot_dimension_numbers<[1], [0], [0], [1], [0, 0, 1, 1], [], []>} : vector<8x128xf32>, vector<128x384xf32>, vector<8x384xf32> -> vector<8x384xf32>
    %20 = arith.addf %19, %7 : vector<8x384xf32>
    %21 = vector.extract_strided_slice %18 {offsets = [0, 0], sizes = [8, 256], strides = [1, 1]} : vector<8x384xf32> to vector<8x256xf32>
    %22 = vector.extract_strided_slice %20 {offsets = [0, 0], sizes = [8, 256], strides = [1, 1]} : vector<8x384xf32> to vector<8x256xf32>
    %23 = arith.addf %21, %22 : vector<8x256xf32>
    %24 = arith.negf %23 : vector<8x256xf32>
    %25 = math.exp %24 : vector<8x256xf32>
    %cst_15 = arith.constant 1.000000e+00 : f32
    %26 = vector.broadcast %cst_15 : f32 to vector<8x256xf32>
    %27 = arith.addf %26, %25 : vector<8x256xf32>
    %28 = arith.divf %26, %27 : vector<8x256xf32>
    %29 = vector.extract_strided_slice %28 {offsets = [0, 0], sizes = [8, 128], strides = [1, 1]} : vector<8x256xf32> to vector<8x128xf32>
    %30 = vector.extract_strided_slice %28 {offsets = [0, 128], sizes = [8, 128], strides = [1, 1]} : vector<8x256xf32> to vector<8x128xf32>
    %31 = vector.extract_strided_slice %18 {offsets = [0, 256], sizes = [8, 128], strides = [1, 1]} : vector<8x384xf32> to vector<8x128xf32>
    %32 = vector.extract_strided_slice %20 {offsets = [0, 256], sizes = [8, 128], strides = [1, 1]} : vector<8x384xf32> to vector<8x128xf32>
    %33 = arith.mulf %29, %32 : vector<8x128xf32>
    %34 = arith.addf %31, %33 : vector<8x128xf32>
    %35 = math.tanh %34 : vector<8x128xf32>
    %cst_16 = arith.constant 1.000000e+00 : f32
    %36 = vector.broadcast %cst_16 : f32 to vector<8x128xf32>
    %37 = arith.subf %36, %30 : vector<8x128xf32>
    %38 = arith.mulf %37, %35 : vector<8x128xf32>
    %39 = arith.mulf %30, %17 : vector<8x128xf32>
    %40 = arith.addf %38, %39 : vector<8x128xf32>
    %41 = vector.extract_strided_slice %16 {offsets = [8, 0], sizes = [8, 384], strides = [1, 1]} : vector<64x384xf32> to vector<8x384xf32>
    %cst_17 = arith.constant dense<0.000000e+00> : vector<8x384xf32>
    %42 = tpu.matmul %40, %2, %cst_17 {dimension_numbers = #tpu.dot_dimension_numbers<[1], [0], [0], [1], [0, 0, 1, 1], [], []>} : vector<8x128xf32>, vector<128x384xf32>, vector<8x384xf32> -> vector<8x384xf32>
    %43 = arith.addf %42, %7 : vector<8x384xf32>
    %44 = vector.extract_strided_slice %41 {offsets = [0, 0], sizes = [8, 256], strides = [1, 1]} : vector<8x384xf32> to vector<8x256xf32>
    %45 = vector.extract_strided_slice %43 {offsets = [0, 0], sizes = [8, 256], strides = [1, 1]} : vector<8x384xf32> to vector<8x256xf32>
    %46 = arith.addf %44, %45 : vector<8x256xf32>
    %47 = arith.negf %46 : vector<8x256xf32>
    %48 = math.exp %47 : vector<8x256xf32>
    %cst_18 = arith.constant 1.000000e+00 : f32
    %49 = vector.broadcast %cst_18 : f32 to vector<8x256xf32>
    %50 = arith.addf %49, %48 : vector<8x256xf32>
    %51 = arith.divf %49, %50 : vector<8x256xf32>
    %52 = vector.extract_strided_slice %51 {offsets = [0, 0], sizes = [8, 128], strides = [1, 1]} : vector<8x256xf32> to vector<8x128xf32>
    %53 = vector.extract_strided_slice %51 {offsets = [0, 128], sizes = [8, 128], strides = [1, 1]} : vector<8x256xf32> to vector<8x128xf32>
    %54 = vector.extract_strided_slice %41 {offsets = [0, 256], sizes = [8, 128], strides = [1, 1]} : vector<8x384xf32> to vector<8x128xf32>
    %55 = vector.extract_strided_slice %43 {offsets = [0, 256], sizes = [8, 128], strides = [1, 1]} : vector<8x384xf32> to vector<8x128xf32>
    %56 = arith.mulf %52, %55 : vector<8x128xf32>
    %57 = arith.addf %54, %56 : vector<8x128xf32>
    %58 = math.tanh %57 : vector<8x128xf32>
    %cst_19 = arith.constant 1.000000e+00 : f32
    %59 = vector.broadcast %cst_19 : f32 to vector<8x128xf32>
    %60 = arith.subf %59, %53 : vector<8x128xf32>
    %61 = arith.mulf %60, %58 : vector<8x128xf32>
    %62 = arith.mulf %53, %40 : vector<8x128xf32>
    %63 = arith.addf %61, %62 : vector<8x128xf32>
    %64 = vector.extract_strided_slice %16 {offsets = [16, 0], sizes = [8, 384], strides = [1, 1]} : vector<64x384xf32> to vector<8x384xf32>
    %cst_20 = arith.constant dense<0.000000e+00> : vector<8x384xf32>
    %65 = tpu.matmul %63, %2, %cst_20 {dimension_numbers = #tpu.dot_dimension_numbers<[1], [0], [0], [1], [0, 0, 1, 1], [], []>} : vector<8x128xf32>, vector<128x384xf32>, vector<8x384xf32> -> vector<8x384xf32>
    %66 = arith.addf %65, %7 : vector<8x384xf32>
    %67 = vector.extract_strided_slice %64 {offsets = [0, 0], sizes = [8, 256], strides = [1, 1]} : vector<8x384xf32> to vector<8x256xf32>
    %68 = vector.extract_strided_slice %66 {offsets = [0, 0], sizes = [8, 256], strides = [1, 1]} : vector<8x384xf32> to vector<8x256xf32>
    %69 = arith.addf %67, %68 : vector<8x256xf32>
    %70 = arith.negf %69 : vector<8x256xf32>
    %71 = math.exp %70 : vector<8x256xf32>
    %cst_21 = arith.constant 1.000000e+00 : f32
    %72 = vector.broadcast %cst_21 : f32 to vector<8x256xf32>
    %73 = arith.addf %72, %71 : vector<8x256xf32>
    %74 = arith.divf %72, %73 : vector<8x256xf32>
    %75 = vector.extract_strided_slice %74 {offsets = [0, 0], sizes = [8, 128], strides = [1, 1]} : vector<8x256xf32> to vector<8x128xf32>
    %76 = vector.extract_strided_slice %74 {offsets = [0, 128], sizes = [8, 128], strides = [1, 1]} : vector<8x256xf32> to vector<8x128xf32>
    %77 = vector.extract_strided_slice %64 {offsets = [0, 256], sizes = [8, 128], strides = [1, 1]} : vector<8x384xf32> to vector<8x128xf32>
    %78 = vector.extract_strided_slice %66 {offsets = [0, 256], sizes = [8, 128], strides = [1, 1]} : vector<8x384xf32> to vector<8x128xf32>
    %79 = arith.mulf %75, %78 : vector<8x128xf32>
    %80 = arith.addf %77, %79 : vector<8x128xf32>
    %81 = math.tanh %80 : vector<8x128xf32>
    %cst_22 = arith.constant 1.000000e+00 : f32
    %82 = vector.broadcast %cst_22 : f32 to vector<8x128xf32>
    %83 = arith.subf %82, %76 : vector<8x128xf32>
    %84 = arith.mulf %83, %81 : vector<8x128xf32>
    %85 = arith.mulf %76, %63 : vector<8x128xf32>
    %86 = arith.addf %84, %85 : vector<8x128xf32>
    %87 = vector.extract_strided_slice %16 {offsets = [24, 0], sizes = [8, 384], strides = [1, 1]} : vector<64x384xf32> to vector<8x384xf32>
    %cst_23 = arith.constant dense<0.000000e+00> : vector<8x384xf32>
    %88 = tpu.matmul %86, %2, %cst_23 {dimension_numbers = #tpu.dot_dimension_numbers<[1], [0], [0], [1], [0, 0, 1, 1], [], []>} : vector<8x128xf32>, vector<128x384xf32>, vector<8x384xf32> -> vector<8x384xf32>
    %89 = arith.addf %88, %7 : vector<8x384xf32>
    %90 = vector.extract_strided_slice %87 {offsets = [0, 0], sizes = [8, 256], strides = [1, 1]} : vector<8x384xf32> to vector<8x256xf32>
    %91 = vector.extract_strided_slice %89 {offsets = [0, 0], sizes = [8, 256], strides = [1, 1]} : vector<8x384xf32> to vector<8x256xf32>
    %92 = arith.addf %90, %91 : vector<8x256xf32>
    %93 = arith.negf %92 : vector<8x256xf32>
    %94 = math.exp %93 : vector<8x256xf32>
    %cst_24 = arith.constant 1.000000e+00 : f32
    %95 = vector.broadcast %cst_24 : f32 to vector<8x256xf32>
    %96 = arith.addf %95, %94 : vector<8x256xf32>
    %97 = arith.divf %95, %96 : vector<8x256xf32>
    %98 = vector.extract_strided_slice %97 {offsets = [0, 0], sizes = [8, 128], strides = [1, 1]} : vector<8x256xf32> to vector<8x128xf32>
    %99 = vector.extract_strided_slice %97 {offsets = [0, 128], sizes = [8, 128], strides = [1, 1]} : vector<8x256xf32> to vector<8x128xf32>
    %100 = vector.extract_strided_slice %87 {offsets = [0, 256], sizes = [8, 128], strides = [1, 1]} : vector<8x384xf32> to vector<8x128xf32>
    %101 = vector.extract_strided_slice %89 {offsets = [0, 256], sizes = [8, 128], strides = [1, 1]} : vector<8x384xf32> to vector<8x128xf32>
    %102 = arith.mulf %98, %101 : vector<8x128xf32>
    %103 = arith.addf %100, %102 : vector<8x128xf32>
    %104 = math.tanh %103 : vector<8x128xf32>
    %cst_25 = arith.constant 1.000000e+00 : f32
    %105 = vector.broadcast %cst_25 : f32 to vector<8x128xf32>
    %106 = arith.subf %105, %99 : vector<8x128xf32>
    %107 = arith.mulf %106, %104 : vector<8x128xf32>
    %108 = arith.mulf %99, %86 : vector<8x128xf32>
    %109 = arith.addf %107, %108 : vector<8x128xf32>
    %110 = vector.extract_strided_slice %16 {offsets = [32, 0], sizes = [8, 384], strides = [1, 1]} : vector<64x384xf32> to vector<8x384xf32>
    %cst_26 = arith.constant dense<0.000000e+00> : vector<8x384xf32>
    %111 = tpu.matmul %109, %2, %cst_26 {dimension_numbers = #tpu.dot_dimension_numbers<[1], [0], [0], [1], [0, 0, 1, 1], [], []>} : vector<8x128xf32>, vector<128x384xf32>, vector<8x384xf32> -> vector<8x384xf32>
    %112 = arith.addf %111, %7 : vector<8x384xf32>
    %113 = vector.extract_strided_slice %110 {offsets = [0, 0], sizes = [8, 256], strides = [1, 1]} : vector<8x384xf32> to vector<8x256xf32>
    %114 = vector.extract_strided_slice %112 {offsets = [0, 0], sizes = [8, 256], strides = [1, 1]} : vector<8x384xf32> to vector<8x256xf32>
    %115 = arith.addf %113, %114 : vector<8x256xf32>
    %116 = arith.negf %115 : vector<8x256xf32>
    %117 = math.exp %116 : vector<8x256xf32>
    %cst_27 = arith.constant 1.000000e+00 : f32
    %118 = vector.broadcast %cst_27 : f32 to vector<8x256xf32>
    %119 = arith.addf %118, %117 : vector<8x256xf32>
    %120 = arith.divf %118, %119 : vector<8x256xf32>
    %121 = vector.extract_strided_slice %120 {offsets = [0, 0], sizes = [8, 128], strides = [1, 1]} : vector<8x256xf32> to vector<8x128xf32>
    %122 = vector.extract_strided_slice %120 {offsets = [0, 128], sizes = [8, 128], strides = [1, 1]} : vector<8x256xf32> to vector<8x128xf32>
    %123 = vector.extract_strided_slice %110 {offsets = [0, 256], sizes = [8, 128], strides = [1, 1]} : vector<8x384xf32> to vector<8x128xf32>
    %124 = vector.extract_strided_slice %112 {offsets = [0, 256], sizes = [8, 128], strides = [1, 1]} : vector<8x384xf32> to vector<8x128xf32>
    %125 = arith.mulf %121, %124 : vector<8x128xf32>
    %126 = arith.addf %123, %125 : vector<8x128xf32>
    %127 = math.tanh %126 : vector<8x128xf32>
    %cst_28 = arith.constant 1.000000e+00 : f32
    %128 = vector.broadcast %cst_28 : f32 to vector<8x128xf32>
    %129 = arith.subf %128, %122 : vector<8x128xf32>
    %130 = arith.mulf %129, %127 : vector<8x128xf32>
    %131 = arith.mulf %122, %109 : vector<8x128xf32>
    %132 = arith.addf %130, %131 : vector<8x128xf32>
    %133 = vector.extract_strided_slice %16 {offsets = [40, 0], sizes = [8, 384], strides = [1, 1]} : vector<64x384xf32> to vector<8x384xf32>
    %cst_29 = arith.constant dense<0.000000e+00> : vector<8x384xf32>
    %134 = tpu.matmul %132, %2, %cst_29 {dimension_numbers = #tpu.dot_dimension_numbers<[1], [0], [0], [1], [0, 0, 1, 1], [], []>} : vector<8x128xf32>, vector<128x384xf32>, vector<8x384xf32> -> vector<8x384xf32>
    %135 = arith.addf %134, %7 : vector<8x384xf32>
    %136 = vector.extract_strided_slice %133 {offsets = [0, 0], sizes = [8, 256], strides = [1, 1]} : vector<8x384xf32> to vector<8x256xf32>
    %137 = vector.extract_strided_slice %135 {offsets = [0, 0], sizes = [8, 256], strides = [1, 1]} : vector<8x384xf32> to vector<8x256xf32>
    %138 = arith.addf %136, %137 : vector<8x256xf32>
    %139 = arith.negf %138 : vector<8x256xf32>
    %140 = math.exp %139 : vector<8x256xf32>
    %cst_30 = arith.constant 1.000000e+00 : f32
    %141 = vector.broadcast %cst_30 : f32 to vector<8x256xf32>
    %142 = arith.addf %141, %140 : vector<8x256xf32>
    %143 = arith.divf %141, %142 : vector<8x256xf32>
    %144 = vector.extract_strided_slice %143 {offsets = [0, 0], sizes = [8, 128], strides = [1, 1]} : vector<8x256xf32> to vector<8x128xf32>
    %145 = vector.extract_strided_slice %143 {offsets = [0, 128], sizes = [8, 128], strides = [1, 1]} : vector<8x256xf32> to vector<8x128xf32>
    %146 = vector.extract_strided_slice %133 {offsets = [0, 256], sizes = [8, 128], strides = [1, 1]} : vector<8x384xf32> to vector<8x128xf32>
    %147 = vector.extract_strided_slice %135 {offsets = [0, 256], sizes = [8, 128], strides = [1, 1]} : vector<8x384xf32> to vector<8x128xf32>
    %148 = arith.mulf %144, %147 : vector<8x128xf32>
    %149 = arith.addf %146, %148 : vector<8x128xf32>
    %150 = math.tanh %149 : vector<8x128xf32>
    %cst_31 = arith.constant 1.000000e+00 : f32
    %151 = vector.broadcast %cst_31 : f32 to vector<8x128xf32>
    %152 = arith.subf %151, %145 : vector<8x128xf32>
    %153 = arith.mulf %152, %150 : vector<8x128xf32>
    %154 = arith.mulf %145, %132 : vector<8x128xf32>
    %155 = arith.addf %153, %154 : vector<8x128xf32>
    %156 = vector.extract_strided_slice %16 {offsets = [48, 0], sizes = [8, 384], strides = [1, 1]} : vector<64x384xf32> to vector<8x384xf32>
    %cst_32 = arith.constant dense<0.000000e+00> : vector<8x384xf32>
    %157 = tpu.matmul %155, %2, %cst_32 {dimension_numbers = #tpu.dot_dimension_numbers<[1], [0], [0], [1], [0, 0, 1, 1], [], []>} : vector<8x128xf32>, vector<128x384xf32>, vector<8x384xf32> -> vector<8x384xf32>
    %158 = arith.addf %157, %7 : vector<8x384xf32>
    %159 = vector.extract_strided_slice %156 {offsets = [0, 0], sizes = [8, 256], strides = [1, 1]} : vector<8x384xf32> to vector<8x256xf32>
    %160 = vector.extract_strided_slice %158 {offsets = [0, 0], sizes = [8, 256], strides = [1, 1]} : vector<8x384xf32> to vector<8x256xf32>
    %161 = arith.addf %159, %160 : vector<8x256xf32>
    %162 = arith.negf %161 : vector<8x256xf32>
    %163 = math.exp %162 : vector<8x256xf32>
    %cst_33 = arith.constant 1.000000e+00 : f32
    %164 = vector.broadcast %cst_33 : f32 to vector<8x256xf32>
    %165 = arith.addf %164, %163 : vector<8x256xf32>
    %166 = arith.divf %164, %165 : vector<8x256xf32>
    %167 = vector.extract_strided_slice %166 {offsets = [0, 0], sizes = [8, 128], strides = [1, 1]} : vector<8x256xf32> to vector<8x128xf32>
    %168 = vector.extract_strided_slice %166 {offsets = [0, 128], sizes = [8, 128], strides = [1, 1]} : vector<8x256xf32> to vector<8x128xf32>
    %169 = vector.extract_strided_slice %156 {offsets = [0, 256], sizes = [8, 128], strides = [1, 1]} : vector<8x384xf32> to vector<8x128xf32>
    %170 = vector.extract_strided_slice %158 {offsets = [0, 256], sizes = [8, 128], strides = [1, 1]} : vector<8x384xf32> to vector<8x128xf32>
    %171 = arith.mulf %167, %170 : vector<8x128xf32>
    %172 = arith.addf %169, %171 : vector<8x128xf32>
    %173 = math.tanh %172 : vector<8x128xf32>
    %cst_34 = arith.constant 1.000000e+00 : f32
    %174 = vector.broadcast %cst_34 : f32 to vector<8x128xf32>
    %175 = arith.subf %174, %168 : vector<8x128xf32>
    %176 = arith.mulf %175, %173 : vector<8x128xf32>
    %177 = arith.mulf %168, %155 : vector<8x128xf32>
    %178 = arith.addf %176, %177 : vector<8x128xf32>
    %179 = vector.extract_strided_slice %16 {offsets = [56, 0], sizes = [8, 384], strides = [1, 1]} : vector<64x384xf32> to vector<8x384xf32>
    %cst_35 = arith.constant dense<0.000000e+00> : vector<8x384xf32>
    %180 = tpu.matmul %178, %2, %cst_35 {dimension_numbers = #tpu.dot_dimension_numbers<[1], [0], [0], [1], [0, 0, 1, 1], [], []>} : vector<8x128xf32>, vector<128x384xf32>, vector<8x384xf32> -> vector<8x384xf32>
    %181 = arith.addf %180, %7 : vector<8x384xf32>
    %182 = vector.extract_strided_slice %179 {offsets = [0, 0], sizes = [8, 256], strides = [1, 1]} : vector<8x384xf32> to vector<8x256xf32>
    %183 = vector.extract_strided_slice %181 {offsets = [0, 0], sizes = [8, 256], strides = [1, 1]} : vector<8x384xf32> to vector<8x256xf32>
    %184 = arith.addf %182, %183 : vector<8x256xf32>
    %185 = arith.negf %184 : vector<8x256xf32>
    %186 = math.exp %185 : vector<8x256xf32>
    %cst_36 = arith.constant 1.000000e+00 : f32
    %187 = vector.broadcast %cst_36 : f32 to vector<8x256xf32>
    %188 = arith.addf %187, %186 : vector<8x256xf32>
    %189 = arith.divf %187, %188 : vector<8x256xf32>
    %190 = vector.extract_strided_slice %189 {offsets = [0, 0], sizes = [8, 128], strides = [1, 1]} : vector<8x256xf32> to vector<8x128xf32>
    %191 = vector.extract_strided_slice %189 {offsets = [0, 128], sizes = [8, 128], strides = [1, 1]} : vector<8x256xf32> to vector<8x128xf32>
    %192 = vector.extract_strided_slice %179 {offsets = [0, 256], sizes = [8, 128], strides = [1, 1]} : vector<8x384xf32> to vector<8x128xf32>
    %193 = vector.extract_strided_slice %181 {offsets = [0, 256], sizes = [8, 128], strides = [1, 1]} : vector<8x384xf32> to vector<8x128xf32>
    %194 = arith.mulf %190, %193 : vector<8x128xf32>
    %195 = arith.addf %192, %194 : vector<8x128xf32>
    %196 = math.tanh %195 : vector<8x128xf32>
    %cst_37 = arith.constant 1.000000e+00 : f32
    %197 = vector.broadcast %cst_37 : f32 to vector<8x128xf32>
    %198 = arith.subf %197, %191 : vector<8x128xf32>
    %199 = arith.mulf %198, %196 : vector<8x128xf32>
    %200 = arith.mulf %191, %178 : vector<8x128xf32>
    %201 = arith.addf %199, %200 : vector<8x128xf32>
    %202 = vector.extract_strided_slice %13 {offsets = [56, 0], sizes = [8, 16], strides = [1, 1]} : vector<64x16xf32> to vector<8x16xf32>
    %cst_38 = arith.constant dense<0.000000e+00> : vector<8x384xf32>
    %203 = tpu.matmul %202, %1, %cst_38 {dimension_numbers = #tpu.dot_dimension_numbers<[1], [0], [0], [1], [0, 0, 1, 1], [], []>} : vector<8x16xf32>, vector<16x384xf32>, vector<8x384xf32> -> vector<8x384xf32>
    %204 = vector.broadcast %8 : vector<1x384xf32> to vector<8x384xf32>
    %205 = arith.addf %203, %204 : vector<8x384xf32>
    %cst_39 = arith.constant 0.000000e+00 : f32
    %206 = vector.broadcast %cst_39 : f32 to vector<8x128xf32>
    %cst_40 = arith.constant dense<0.000000e+00> : vector<8x384xf32>
    %207 = tpu.matmul %206, %3, %cst_40 {dimension_numbers = #tpu.dot_dimension_numbers<[1], [0], [0], [1], [0, 0, 1, 1], [], []>} : vector<8x128xf32>, vector<128x384xf32>, vector<8x384xf32> -> vector<8x384xf32>
    %208 = arith.addf %207, %11 : vector<8x384xf32>
    %209 = vector.extract_strided_slice %205 {offsets = [0, 0], sizes = [8, 256], strides = [1, 1]} : vector<8x384xf32> to vector<8x256xf32>
    %210 = vector.extract_strided_slice %208 {offsets = [0, 0], sizes = [8, 256], strides = [1, 1]} : vector<8x384xf32> to vector<8x256xf32>
    %211 = arith.addf %209, %210 : vector<8x256xf32>
    %212 = arith.negf %211 : vector<8x256xf32>
    %213 = math.exp %212 : vector<8x256xf32>
    %cst_41 = arith.constant 1.000000e+00 : f32
    %214 = vector.broadcast %cst_41 : f32 to vector<8x256xf32>
    %215 = arith.addf %214, %213 : vector<8x256xf32>
    %216 = arith.divf %214, %215 : vector<8x256xf32>
    %217 = vector.extract_strided_slice %216 {offsets = [0, 0], sizes = [8, 128], strides = [1, 1]} : vector<8x256xf32> to vector<8x128xf32>
    %218 = vector.extract_strided_slice %216 {offsets = [0, 128], sizes = [8, 128], strides = [1, 1]} : vector<8x256xf32> to vector<8x128xf32>
    %219 = vector.extract_strided_slice %205 {offsets = [0, 256], sizes = [8, 128], strides = [1, 1]} : vector<8x384xf32> to vector<8x128xf32>
    %220 = vector.extract_strided_slice %208 {offsets = [0, 256], sizes = [8, 128], strides = [1, 1]} : vector<8x384xf32> to vector<8x128xf32>
    %221 = arith.mulf %217, %220 : vector<8x128xf32>
    %222 = arith.addf %219, %221 : vector<8x128xf32>
    %223 = math.tanh %222 : vector<8x128xf32>
    %cst_42 = arith.constant 1.000000e+00 : f32
    %224 = vector.broadcast %cst_42 : f32 to vector<8x128xf32>
    %225 = arith.subf %224, %218 : vector<8x128xf32>
    %226 = arith.mulf %225, %223 : vector<8x128xf32>
    %227 = arith.mulf %218, %206 : vector<8x128xf32>
    %228 = arith.addf %226, %227 : vector<8x128xf32>
    %229 = tpu.concatenate %201, %228 in 1 : vector<8x128xf32>, vector<8x128xf32> -> vector<8x256xf32>
    %c0_43 = arith.constant 0 : index
    %c0_44 = arith.constant 0 : index
    %230 = vector.load %arg3[%c0_43, %c0_44] : memref<256x128xf32, #tpu.memory_space<vmem>>, vector<256x128xf32>
    %cst_45 = arith.constant dense<0.000000e+00> : vector<8x128xf32>
    %231 = tpu.matmul %229, %230, %cst_45 {dimension_numbers = #tpu.dot_dimension_numbers<[1], [0], [0], [1], [0, 0, 1, 1], [], []>} : vector<8x256xf32>, vector<256x128xf32>, vector<8x128xf32> -> vector<8x128xf32>
    %232 = vector.broadcast %12 : vector<1x128xf32> to vector<8x128xf32>
    %233 = arith.addf %231, %232 : vector<8x128xf32>
    %c0_46 = arith.constant 0 : index
    %c0_47 = arith.constant 0 : index
    %234 = vector.load %arg4[%c0_46, %c0_47] : memref<8x128xf32, #tpu.memory_space<vmem>>, vector<8x128xf32>
    tpu.vector_store %arg4[%c0_46, %c0_47], %233 {strides = array<i32>} : memref<8x128xf32, #tpu.memory_space<vmem>>, vector<8x128xf32>,
    return
  }
}

</mosaic_0001>

<llo_original>
// kernel: tpu_custom_call.1
$region0: #{tpu_custom_call.1}
  #allocation0 [shape = 'u32[]', space=smem, size = 0x4, offset = 0x4, fixed_abs, tag = 'smem constant byte address 0x4 - core index']
  #allocation1 [shape = 'u32[144,128]{1,0:T(1,128)}', space=vmem, size = 0x12000, scoped, tag = 'internal scratch']
  %s0 = inlined_call_operand.vmem [shape: f32[64,16], index: 0, kind: input, shape index: {}]
  %s1 = inlined_call_operand.hbm [shape: f32[144,768], index: 1, kind: input, shape index: {}]
  %s2 = inlined_call_operand.vmem [shape: f32[8,384], index: 2, kind: input, shape index: {}]
  %s3 = inlined_call_operand.hbm [shape: f32[256,128], index: 3, kind: input, shape index: {}]
  %s4 = inlined_call_operand.hbm [shape: f32[8,128], index: 4, kind: output, shape index: {}]
  %s5 = sld [smem:[#allocation0]]
  $region34: #{tpu_custom_call.1} parent=0
    _
  %s7 = ssub.s32 1, %s5
  %s8 = scalar_select 0, %s7, %s5
  $region1: #{tpu_custom_call.1} parent=0
    #allocation2 [shape = 'u8[442368]{0}', space=vmem, size = 0x6c000, scoped, tag = 'input window, operand 1, single buffered']
    #allocation3 [shape = 's32[1]{0}', space=sflag, size = 0x4, scoped, tag = 'scoped memory for tpu_custom_call.1']
    #allocation4 [shape = 's32[1]{0}', space=sflag, size = 0x4, scoped, tag = 'scoped memory for tpu_custom_call.1']
    #allocation5 [shape = 'u8[131072]{0}', space=vmem, size = 0x20000, scoped, tag = 'input window, operand 3, single buffered']
    #allocation6 [shape = 's32[1]{0}', space=sflag, size = 0x4, scoped, tag = 'scoped memory for tpu_custom_call.1']
    #allocation7 [shape = 'u8[4096]{0}', space=vmem, size = 0x1000, scoped, tag = 'output window, operand 0, single buffered']
    %9 = vsyncpa [#allocation3], 0
    %10 = vsyncpa [#allocation6], 0
    %11 = vsyncpa [#allocation4], 0
    // Predicated region
    $region2: #{tpu_custom_call.1} parent=1 // pred_check
      _
    $region3: #{tpu_custom_call.1} parent=1 // pred_check_branch
      %13 = sbr.rel (0) target = $region5
    $region4: #{tpu_custom_call.1} parent=1 // pred_region
      _
    $region5: #{tpu_custom_call.1} parent=1 // pred_fallthru
      _
    // Predicated region
    $region6: #{tpu_custom_call.1} parent=1 // pred_check
      _
    $region7: #{tpu_custom_call.1} parent=1 // pred_check_branch
      %15 = sbr.rel (0) target = $region9
    $region8: #{tpu_custom_call.1} parent=1 // pred_region
      %s17 = ssub.s32 13824, 13824
      %18 = vsyncadd [#allocation3], %s17
      %s19 = sshll.u32 [#allocation2], 4
      %s20 = int_to_ptr.vmem [resolvable:$true] %s19
      %25 = dma.hbm_to_vmem [thread:$0]  %s1, 13824, %s20, [#allocation3], 768, 768, 48
    $region9: #{tpu_custom_call.1} parent=1 // pred_fallthru
      _
    // Predicated region
    $region10: #{tpu_custom_call.1} parent=1 // pred_check
      _
    $region11: #{tpu_custom_call.1} parent=1 // pred_check_branch
      %27 = sbr.rel (0) target = $region13
    $region12: #{tpu_custom_call.1} parent=1 // pred_region
      _
    $region13: #{tpu_custom_call.1} parent=1 // pred_fallthru
      _
    // Predicated region
    $region14: #{tpu_custom_call.1} parent=1 // pred_check
      _
    $region15: #{tpu_custom_call.1} parent=1 // pred_check_branch
      %29 = sbr.rel (0) target = $region17
    $region16: #{tpu_custom_call.1} parent=1 // pred_region
      %s31 = ssub.s32 4096, 4096
      %32 = vsyncadd [#allocation6], %s31
      %s33 = sshll.u32 [#allocation5], 4
      %s34 = int_to_ptr.vmem [resolvable:$true] %s33
      %39 = dma.hbm_to_vmem [thread:$0]  %s3, 4096, %s34, [#allocation6], 128, 128, 8
    $region17: #{tpu_custom_call.1} parent=1 // pred_fallthru
      _
    // Predicated region
    $region18: #{tpu_custom_call.1} parent=1 // pred_check
      _
    $region19: #{tpu_custom_call.1} parent=1 // pred_check_branch
      %41 = sbr.rel (0) target = $region21
    $region20: #{tpu_custom_call.1} parent=1 // pred_region
      %42 = dma.done [#allocation3], 13824
    $region21: #{tpu_custom_call.1} parent=1 // pred_fallthru
      _
    // Predicated region
    $region22: #{tpu_custom_call.1} parent=1 // pred_check
      _
    $region23: #{tpu_custom_call.1} parent=1 // pred_check_branch
      %44 = sbr.rel (0) target = $region25
    $region24: #{tpu_custom_call.1} parent=1 // pred_region
      %45 = dma.done [#allocation6], 4096
    $region25: #{tpu_custom_call.1} parent=1 // pred_fallthru
      _
    %v46 = vld [vmem:[#allocation2] sm:$0xff]
    %v47 = vld [vmem:[#allocation2 + $0x8] sm:$0xff]
    %v48 = vld [vmem:[#allocation2 + $0x10] sm:$0xff]
    %v49 = vld [vmem:[#allocation2 + $0x30] sm:$0xff]
    %v50 = vld [vmem:[#allocation2 + $0x38] sm:$0xff]
    %v51 = vld [vmem:[#allocation2 + $0x40] sm:$0xff]
    %v52 = vld [vmem:[#allocation2 + $0x18] sm:$0xff]
    %v53 = vld [vmem:[#allocation2 + $0x20] sm:$0xff]
    %v54 = vld [vmem:[#allocation2 + $0x28] sm:$0xff]
    %v55 = vld [vmem:[#allocation2 + $0x48] sm:$0xff]
    %v56 = vld [vmem:[#allocation2 + $0x50] sm:$0xff]
    %v57 = vld [vmem:[#allocation2 + $0x58] sm:$0xff]
    %v58 = vld [vmem:[#allocation2 + $0x60] sm:$0xff]
    %v59 = vld [vmem:[#allocation2 + $0x68] sm:$0xff]
    %v60 = vld [vmem:[#allocation2 + $0x70] sm:$0xff]
    %v61 = vld [vmem:[#allocation2 + $0x90] sm:$0xff]
    %v62 = vld [vmem:[#allocation2 + $0x98] sm:$0xff]
    %v63 = vld [vmem:[#allocation2 + $0xa0] sm:$0xff]
    %v64 = vld [vmem:[#allocation2 + $0xc0] sm:$0xff]
    %v65 = vld [vmem:[#allocation2 + $0xc8] sm:$0xff]
    %v66 = vld [vmem:[#allocation2 + $0xd0] sm:$0xff]
    %v67 = vld [vmem:[#allocation2 + $0xf0] sm:$0xff]
    %v68 = vld [vmem:[#allocation2 + $0xf8] sm:$0xff]
    %v69 = vld [vmem:[#allocation2 + $0x100] sm:$0xff]
    %v70 = vld [vmem:[#allocation2 + $0x120] sm:$0xff]
    %v71 = vld [vmem:[#allocation2 + $0x128] sm:$0xff]
    %v72 = vld [vmem:[#allocation2 + $0x130] sm:$0xff]
    %v73 = vld [vmem:[#allocation2 + $0x150] sm:$0xff]
    %v74 = vld [vmem:[#allocation2 + $0x158] sm:$0xff]
    %v75 = vld [vmem:[#allocation2 + $0x160] sm:$0xff]
    %v76 = vld [vmem:[#allocation2 + $0x180] sm:$0xff]
    %v77 = vld [vmem:[#allocation2 + $0x188] sm:$0xff]
    %v78 = vld [vmem:[#allocation2 + $0x190] sm:$0xff]
    %v79 = vld [vmem:[#allocation2 + $0x1b0] sm:$0xff]
    %v80 = vld [vmem:[#allocation2 + $0x1b8] sm:$0xff]
    %v81 = vld [vmem:[#allocation2 + $0x1c0] sm:$0xff]
    %v82 = vld [vmem:[#allocation2 + $0x1e0] sm:$0xff]
    %v83 = vld [vmem:[#allocation2 + $0x1e8] sm:$0xff]
    %v84 = vld [vmem:[#allocation2 + $0x1f0] sm:$0xff]
    %v85 = vld [vmem:[#allocation2 + $0x210] sm:$0xff]
    %v86 = vld [vmem:[#allocation2 + $0x218] sm:$0xff]
    %v87 = vld [vmem:[#allocation2 + $0x220] sm:$0xff]
    %v88 = vld [vmem:[#allocation2 + $0x240] sm:$0xff]
    %v89 = vld [vmem:[#allocation2 + $0x248] sm:$0xff]
    %v90 = vld [vmem:[#allocation2 + $0x250] sm:$0xff]
    %v91 = vld [vmem:[#allocation2 + $0x270] sm:$0xff]
    %v92 = vld [vmem:[#allocation2 + $0x278] sm:$0xff]
    %v93 = vld [vmem:[#allocation2 + $0x280] sm:$0xff]
    %v94 = vld [vmem:[#allocation2 + $0x2a0] sm:$0xff]
    %v95 = vld [vmem:[#allocation2 + $0x2a8] sm:$0xff]
    %v96 = vld [vmem:[#allocation2 + $0x2b0] sm:$0xff]
    %v97 = vld [vmem:[#allocation2 + $0x2d0] sm:$0xff]
    %v98 = vld [vmem:[#allocation2 + $0x2d8] sm:$0xff]
    %v99 = vld [vmem:[#allocation2 + $0x2e0] sm:$0xff]
    %v100 = vld [vmem:[#allocation2 + $0x300] sm:$0xff]
    %v101 = vld [vmem:[#allocation2 + $0x308] sm:$0xff]
    %v102 = vld [vmem:[#allocation2 + $0x310] sm:$0xff]
    %v103 = vld [vmem:[#allocation2 + $0x330] sm:$0xff]
    %v104 = vld [vmem:[#allocation2 + $0x338] sm:$0xff]
    %v105 = vld [vmem:[#allocation2 + $0x340] sm:$0xff]
    %v106 = vld [vmem:[#allocation2 + $0x78] sm:$0xff]
    %v107 = vld [vmem:[#allocation2 + $0x80] sm:$0xff]
    %v108 = vld [vmem:[#allocation2 + $0x88] sm:$0xff]
    %v109 = vld [vmem:[#allocation2 + $0xa8] sm:$0xff]
    %v110 = vld [vmem:[#allocation2 + $0xb0] sm:$0xff]
    %v111 = vld [vmem:[#allocation2 + $0xb8] sm:$0xff]
    %v112 = vld [vmem:[#allocation2 + $0xd8] sm:$0xff]
    %v113 = vld [vmem:[#allocation2 + $0xe0] sm:$0xff]
    %v114 = vld [vmem:[#allocation2 + $0xe8] sm:$0xff]
    %v115 = vld [vmem:[#allocation2 + $0x108] sm:$0xff]
    %v116 = vld [vmem:[#allocation2 + $0x110] sm:$0xff]
    %v117 = vld [vmem:[#allocation2 + $0x118] sm:$0xff]
    %v118 = vld [vmem:[#allocation2 + $0x138] sm:$0xff]
    %v119 = vld [vmem:[#allocation2 + $0x140] sm:$0xff]
    %v120 = vld [vmem:[#allocation2 + $0x148] sm:$0xff]
    %v121 = vld [vmem:[#allocation2 + $0x168] sm:$0xff]
    %v122 = vld [vmem:[#allocation2 + $0x170] sm:$0xff]
    %v123 = vld [vmem:[#allocation2 + $0x178] sm:$0xff]
    %v124 = vld [vmem:[#allocation2 + $0x198] sm:$0xff]
    %v125 = vld [vmem:[#allocation2 + $0x1a0] sm:$0xff]
    %v126 = vld [vmem:[#allocation2 + $0x1a8] sm:$0xff]
    %v127 = vld [vmem:[#allocation2 + $0x1c8] sm:$0xff]
    %v128 = vld [vmem:[#allocation2 + $0x1d0] sm:$0xff]
    %v129 = vld [vmem:[#allocation2 + $0x1d8] sm:$0xff]
    %v130 = vld [vmem:[#allocation2 + $0x1f8] sm:$0xff]
    %v131 = vld [vmem:[#allocation2 + $0x200] sm:$0xff]
    %v132 = vld [vmem:[#allocation2 + $0x208] sm:$0xff]
    %v133 = vld [vmem:[#allocation2 + $0x228] sm:$0xff]
    %v134 = vld [vmem:[#allocation2 + $0x230] sm:$0xff]
    %v135 = vld [vmem:[#allocation2 + $0x238] sm:$0xff]
    %v136 = vld [vmem:[#allocation2 + $0x258] sm:$0xff]
    %v137 = vld [vmem:[#allocation2 + $0x260] sm:$0xff]
    %v138 = vld [vmem:[#allocation2 + $0x268] sm:$0xff]
    %v139 = vld [vmem:[#allocation2 + $0x288] sm:$0xff]
    %v140 = vld [vmem:[#allocation2 + $0x290] sm:$0xff]
    %v141 = vld [vmem:[#allocation2 + $0x298] sm:$0xff]
    %v142 = vld [vmem:[#allocation2 + $0x2b8] sm:$0xff]
    %v143 = vld [vmem:[#allocation2 + $0x2c0] sm:$0xff]
    %v144 = vld [vmem:[#allocation2 + $0x2c8] sm:$0xff]
    %v145 = vld [vmem:[#allocation2 + $0x2e8] sm:$0xff]
    %v146 = vld [vmem:[#allocation2 + $0x2f0] sm:$0xff]
    %v147 = vld [vmem:[#allocation2 + $0x2f8] sm:$0xff]
    %v148 = vld [vmem:[#allocation2 + $0x318] sm:$0xff]
    %v149 = vld [vmem:[#allocation2 + $0x320] sm:$0xff]
    %v150 = vld [vmem:[#allocation2 + $0x328] sm:$0xff]
    %v151 = vld [vmem:[#allocation2 + $0x348] sm:$0xff]
    %v152 = vld [vmem:[#allocation2 + $0x350] sm:$0xff]
    %v153 = vld [vmem:[#allocation2 + $0x358] sm:$0xff]
    %v154 = vld [vmem:[%s2] ss:$8 sm:$0x7]
    %s155 = scalar_lea.vmem %s2, 1
    %v156 = vld [vmem:[%s155] ss:$8 sm:$0x7]
    %v158 = vlaneseq
    %v159 = vshrl.u32 %v158, 7
    %v160 = vsub.s32 0, %v159
    %v161 = vrot.slane %v156, %v160
    %v162 = vlaneseq
    %v163 = vshrl.u32 %v162, 7
    %v164 = vsub.s32 1, %v163
    %v165 = vrot.slane %v156, %v164
    %v166 = vlaneseq
    %v167 = vshrl.u32 %v166, 7
    %v168 = vsub.s32 2, %v167
    %v169 = vrot.slane %v156, %v168
    %s173 = scalar_lea.vmem %s2, 2
    %v174 = vld [vmem:[%s173] ss:$8 sm:$0x7]
    %s175 = scalar_lea.vmem %s2, 3
    %v176 = vld [vmem:[%s175] ss:$8 sm:$0x7]
    %v178 = vlaneseq
    %v179 = vshrl.u32 %v178, 7
    %v180 = vsub.s32 0, %v179
    %v181 = vrot.slane %v176, %v180
    %v182 = vlaneseq
    %v183 = vshrl.u32 %v182, 7
    %v184 = vsub.s32 1, %v183
    %v185 = vrot.slane %v176, %v184
    %v186 = vlaneseq
    %v187 = vshrl.u32 %v186, 7
    %v188 = vsub.s32 2, %v187
    %v189 = vrot.slane %v176, %v188
    %v193 = vld [vmem:[%s2 + $0x4] ss:$0 sm:$0xff]
    %v194 = vld [vmem:[%s0] sm:$0xff]
    %v195 = vld [vmem:[%s0 + $0x8] sm:$0xff]
    %v196 = vld [vmem:[%s0 + $0x10] sm:$0xff]
    %v197 = vld [vmem:[%s0 + $0x18] sm:$0xff]
    %v198 = vld [vmem:[%s0 + $0x20] sm:$0xff]
    %v199 = vld [vmem:[%s0 + $0x28] sm:$0xff]
    %v200 = vld [vmem:[%s0 + $0x30] sm:$0xff]
    %v201 = vld [vmem:[%s0 + $0x38] sm:$0xff]
    %v203 = vlaneseq
    %v204 = vshrl.u32 %v203, 7
    %v205 = vsub.s32 0, %v204
    %v206 = vrot.slane %v154, %v205
    %v207 = vlaneseq
    %v208 = vshrl.u32 %v207, 7
    %v209 = vsub.s32 1, %v208
    %v210 = vrot.slane %v154, %v209
    %v211 = vlaneseq
    %v212 = vshrl.u32 %v211, 7
    %v213 = vsub.s32 2, %v212
    %v214 = vrot.slane %v154, %v213
    %vm218 = vcmask 130048
    %v220 = vsel %vm218, %v194, 0
    %v223 = vsel %vm218, %v195, 0
    %v226 = vsel %vm218, %v196, 0
    %v229 = vsel %vm218, %v197, 0
    %v232 = vsel %vm218, %v198, 0
    %v235 = vsel %vm218, %v199, 0
    %v238 = vsel %vm218, %v200, 0
    %v241 = vsel %vm218, %v201, 0
    %243 = vmatprep.subr.mxu0 0.0
    %244 = vmatpush1.msra.mxu0 0.0
    %245 = vmatprep.subr.mxu0 0.0
    %246 = vmatpush1.msra.mxu0 0.0
    %247 = vmatprep.subr.mxu0 0.0
    %248 = vmatpush1.msra.mxu0 0.0
    %249 = vmatprep.subr.mxu0 0.0
    %250 = vmatpush1.msra.mxu0 0.0
    %251 = vmatprep.subr.mxu0 0.0
    %252 = vmatpush1.msra.mxu0 0.0
    %253 = vmatprep.subr.mxu0 0.0
    %254 = vmatpush1.msra.mxu0 0.0
    %255 = vmatprep.subr.mxu0 0.0
    %256 = vmatpush1.msra.mxu0 0.0
    %257 = vmatprep.subr.mxu0 0.0
    %258 = vmatpush1.msra.mxu0 0.0
    %259 = vmatprep.subr.mxu0 0.0
    %260 = vmatpush1.msra.mxu0 0.0
    %261 = vmatprep.subr.mxu0 0.0
    %262 = vmatpush1.msra.mxu0 0.0
    %263 = vmatprep.subr.mxu0 0.0
    %264 = vmatpush1.msra.mxu0 0.0
    %265 = vmatprep.subr.mxu0 0.0
    %266 = vmatpush1.msra.mxu0 0.0
    %267 = vmatprep.subr.mxu0 0.0
    %268 = vmatpush1.msra.mxu0 0.0
    %269 = vmatprep.subr.mxu0 0.0
    %270 = vmatpush1.msra.mxu0 0.0
    %271 = vmatprep.subr.mxu0 %v50
    %272 = vmatpush1.msra.mxu0 %v49
    %273 = vmatprep.subr.mxu0 %v47
    %274 = vmatpush1.msra.mxu0 %v46
    %275 = vmatprep.subr.mxu0 0.0
    %276 = vmatpush2.msra.mxu0 0.0
    %277 = vmatprep.subr.mxu0 0.0
    %278 = vmatpush2.msra.mxu0 0.0
    %279 = vmatprep.subr.mxu0 0.0
    %280 = vmatpush2.msra.mxu0 0.0
    %281 = vmatprep.subr.mxu0 0.0
    %282 = vmatpush2.msra.mxu0 0.0
    %283 = vmatprep.subr.mxu0 0.0
    %284 = vmatpush2.msra.mxu0 0.0
    %285 = vmatprep.subr.mxu0 0.0
    %286 = vmatpush2.msra.mxu0 0.0
    %287 = vmatprep.subr.mxu0 0.0
    %288 = vmatpush2.msra.mxu0 0.0
    %289 = vmatprep.subr.mxu0 0.0
    %290 = vmatpush2.msra.mxu0 0.0
    %291 = vmatprep.subr.mxu0 0.0
    %292 = vmatpush2.msra.mxu0 0.0
    %293 = vmatprep.subr.mxu0 0.0
    %294 = vmatpush2.msra.mxu0 0.0
    %295 = vmatprep.subr.mxu0 0.0
    %296 = vmatpush2.msra.mxu0 0.0
    %297 = vmatprep.subr.mxu0 0.0
    %298 = vmatpush2.msra.mxu0 0.0
    %299 = vmatprep.subr.mxu0 0.0
    %300 = vmatpush2.msra.mxu0 0.0
    %301 = vmatprep.subr.mxu0 0.0
    %302 = vmatpush2.msra.mxu0 0.0
    %303 = vmatprep.subr.mxu0 0.0
    %304 = vmatpush2.msra.mxu0 0.0
    %305 = vmatprep.subr.mxu0 0.0
    %306 = vmatpush2.msra.mxu0 0.0
    %307 = vmatprep.mubr.f32.mxu0 0.0
    %308 = vmatmul.mubr.f32.gmra.mxu0 %v220
    %v309 = vpop.f32.mrf.mxu0
    %v310 = vadd.f32 %v206, %v309
    %v311 = vpop.f32.mrf.mxu0
    %v312 = vadd.f32 %v210, %v311
    %313 = vmatprep.mubr.f32.mxu0 0.0
    %314 = vmatmul.mubr.f32.gmra.mxu0 %v223
    %v315 = vpop.f32.mrf.mxu0
    %v316 = vadd.f32 %v206, %v315
    %v317 = vpop.f32.mrf.mxu0
    %v318 = vadd.f32 %v210, %v317
    %319 = vmatprep.mubr.f32.mxu0 0.0
    %320 = vmatmul.mubr.f32.gmra.mxu0 %v226
    %v321 = vpop.f32.mrf.mxu0
    %v322 = vadd.f32 %v206, %v321
    %v323 = vpop.f32.mrf.mxu0
    %v324 = vadd.f32 %v210, %v323
    %325 = vmatprep.mubr.f32.mxu0 0.0
    %326 = vmatmul.mubr.f32.gmra.mxu0 %v229
    %v327 = vpop.f32.mrf.mxu0
    %v328 = vadd.f32 %v206, %v327
    %v329 = vpop.f32.mrf.mxu0
    %v330 = vadd.f32 %v210, %v329
    %331 = vmatprep.mubr.f32.mxu0 0.0
    %332 = vmatmul.mubr.f32.gmra.mxu0 %v232
    %v333 = vpop.f32.mrf.mxu0
    %v334 = vadd.f32 %v206, %v333
    %v335 = vpop.f32.mrf.mxu0
    %v336 = vadd.f32 %v210, %v335
    %337 = vmatprep.mubr.f32.mxu0 0.0
    %338 = vmatmul.mubr.f32.gmra.mxu0 %v235
    %v339 = vpop.f32.mrf.mxu0
    %v340 = vadd.f32 %v206, %v339
    %v341 = vpop.f32.mrf.mxu0
    %v342 = vadd.f32 %v210, %v341
    %343 = vmatprep.mubr.f32.mxu0 0.0
    %344 = vmatmul.mubr.f32.gmra.mxu0 %v238
    %v345 = vpop.f32.mrf.mxu0
    %v346 = vadd.f32 %v206, %v345
    %v347 = vpop.f32.mrf.mxu0
    %v348 = vadd.f32 %v210, %v347
    %349 = vmatprep.mubr.f32.mxu0 0.0
    %350 = vmatmul.mubr.f32.gmra.mxu0 %v241
    %v351 = vpop.f32.mrf.mxu0
    %v352 = vadd.f32 %v206, %v351
    %v353 = vpop.f32.mrf.mxu0
    %v354 = vadd.f32 %v210, %v353
    %355 = vdwg.mxu0
    %356 = vmatprep.subr.mxu0 0.0
    %357 = vmatpush1.msra.mxu0 0.0
    %358 = vmatprep.subr.mxu0 0.0
    %359 = vmatpush1.msra.mxu0 0.0
    %360 = vmatprep.subr.mxu0 0.0
    %361 = vmatpush1.msra.mxu0 0.0
    %362 = vmatprep.subr.mxu0 0.0
    %363 = vmatpush1.msra.mxu0 0.0
    %364 = vmatprep.subr.mxu0 0.0
    %365 = vmatpush1.msra.mxu0 0.0
    %366 = vmatprep.subr.mxu0 0.0
    %367 = vmatpush1.msra.mxu0 0.0
    %368 = vmatprep.subr.mxu0 0.0
    %369 = vmatpush1.msra.mxu0 0.0
    %370 = vmatprep.subr.mxu0 0.0
    %371 = vmatpush1.msra.mxu0 0.0
    %372 = vmatprep.subr.mxu0 0.0
    %373 = vmatpush1.msra.mxu0 0.0
    %374 = vmatprep.subr.mxu0 0.0
    %375 = vmatpush1.msra.mxu0 0.0
    %376 = vmatprep.subr.mxu0 0.0
    %377 = vmatpush1.msra.mxu0 0.0
    %378 = vmatprep.subr.mxu0 0.0
    %379 = vmatpush1.msra.mxu0 0.0
    %380 = vmatprep.subr.mxu0 0.0
    %381 = vmatpush1.msra.mxu0 0.0
    %382 = vmatprep.subr.mxu0 0.0
    %383 = vmatpush1.msra.mxu0 0.0
    %384 = vmatprep.subr.mxu0 0.0
    %385 = vmatpush1.msra.mxu0 %v51
    %386 = vmatprep.subr.mxu0 0.0
    %387 = vmatpush1.msra.mxu0 %v48
    %388 = vmatprep.subr.mxu0 0.0
    %389 = vmatpush2.msra.mxu0 0.0
    %390 = vmatprep.subr.mxu0 0.0
    %391 = vmatpush2.msra.mxu0 0.0
    %392 = vmatprep.subr.mxu0 0.0
    %393 = vmatpush2.msra.mxu0 0.0
    %394 = vmatprep.subr.mxu0 0.0
    %395 = vmatpush2.msra.mxu0 0.0
    %396 = vmatprep.subr.mxu0 0.0
    %397 = vmatpush2.msra.mxu0 0.0
    %398 = vmatprep.subr.mxu0 0.0
    %399 = vmatpush2.msra.mxu0 0.0
    %400 = vmatprep.subr.mxu0 0.0
    %401 = vmatpush2.msra.mxu0 0.0
    %402 = vmatprep.subr.mxu0 0.0
    %403 = vmatpush2.msra.mxu0 0.0
    %404 = vmatprep.subr.mxu0 0.0
    %405 = vmatpush2.msra.mxu0 0.0
    %406 = vmatprep.subr.mxu0 0.0
    %407 = vmatpush2.msra.mxu0 0.0
    %408 = vmatprep.subr.mxu0 0.0
    %409 = vmatpush2.msra.mxu0 0.0
    %410 = vmatprep.subr.mxu0 0.0
    %411 = vmatpush2.msra.mxu0 0.0
    %412 = vmatprep.subr.mxu0 0.0
    %413 = vmatpush2.msra.mxu0 0.0
    %414 = vmatprep.subr.mxu0 0.0
    %415 = vmatpush2.msra.mxu0 0.0
    %416 = vmatprep.subr.mxu0 0.0
    %417 = vmatpush2.msra.mxu0 0.0
    %418 = vmatprep.subr.mxu0 0.0
    %419 = vmatpush2.msra.mxu0 0.0
    %420 = vmatprep.mubr.f32.mxu0 0.0
    %421 = vmatmul.mubr.f32.gmra.mxu0 %v220
    %v422 = vpop.f32.mrf.mxu0
    %v423 = vadd.f32 %v214, %v422
    %v424 = vpop.f32.mrf.mxu0
    %425 = vmatprep.mubr.f32.mxu0 0.0
    %426 = vmatmul.mubr.f32.gmra.mxu0 %v223
    %v427 = vpop.f32.mrf.mxu0
    %v428 = vadd.f32 %v214, %v427
    %v429 = vpop.f32.mrf.mxu0
    %430 = vmatprep.mubr.f32.mxu0 0.0
    %431 = vmatmul.mubr.f32.gmra.mxu0 %v226
    %v432 = vpop.f32.mrf.mxu0
    %v433 = vadd.f32 %v214, %v432
    %v434 = vpop.f32.mrf.mxu0
    %435 = vmatprep.mubr.f32.mxu0 0.0
    %436 = vmatmul.mubr.f32.gmra.mxu0 %v229
    %v437 = vpop.f32.mrf.mxu0
    %v438 = vadd.f32 %v214, %v437
    %v439 = vpop.f32.mrf.mxu0
    %440 = vmatprep.mubr.f32.mxu0 0.0
    %441 = vmatmul.mubr.f32.gmra.mxu0 %v232
    %v442 = vpop.f32.mrf.mxu0
    %v443 = vadd.f32 %v214, %v442
    %v444 = vpop.f32.mrf.mxu0
    %445 = vmatprep.mubr.f32.mxu0 0.0
    %446 = vmatmul.mubr.f32.gmra.mxu0 %v235
    %v447 = vpop.f32.mrf.mxu0
    %v448 = vadd.f32 %v214, %v447
    %v449 = vpop.f32.mrf.mxu0
    %450 = vmatprep.mubr.f32.mxu0 0.0
    %451 = vmatmul.mubr.f32.gmra.mxu0 %v238
    %v452 = vpop.f32.mrf.mxu0
    %v453 = vadd.f32 %v214, %v452
    %v454 = vpop.f32.mrf.mxu0
    %455 = vmatprep.mubr.f32.mxu0 0.0
    %456 = vmatmul.mubr.f32.gmra.mxu0 %v241
    %v457 = vpop.f32.mrf.mxu0
    %v458 = vadd.f32 %v214, %v457
    %v459 = vpop.f32.mrf.mxu0
    %460 = vdwg.mxu0
    %461 = vmatprep.subr.mxu0 %v104
    %462 = vmatpush1.msra.mxu0 %v103
    %463 = vmatprep.subr.mxu0 %v101
    %464 = vmatpush1.msra.mxu0 %v100
    %465 = vmatprep.subr.mxu0 %v98
    %466 = vmatpush1.msra.mxu0 %v97
    %467 = vmatprep.subr.mxu0 %v95
    %468 = vmatpush1.msra.mxu0 %v94
    %469 = vmatprep.subr.mxu0 %v92
    %470 = vmatpush1.msra.mxu0 %v91
    %471 = vmatprep.subr.mxu0 %v89
    %472 = vmatpush1.msra.mxu0 %v88
    %473 = vmatprep.subr.mxu0 %v86
    %474 = vmatpush1.msra.mxu0 %v85
    %475 = vmatprep.subr.mxu0 %v83
    %476 = vmatpush1.msra.mxu0 %v82
    %477 = vmatprep.subr.mxu0 %v80
    %478 = vmatpush1.msra.mxu0 %v79
    %479 = vmatprep.subr.mxu0 %v77
    %480 = vmatpush1.msra.mxu0 %v76
    %481 = vmatprep.subr.mxu0 %v74
    %482 = vmatpush1.msra.mxu0 %v73
    %483 = vmatprep.subr.mxu0 %v71
    %484 = vmatpush1.msra.mxu0 %v70
    %485 = vmatprep.subr.mxu0 %v68
    %486 = vmatpush1.msra.mxu0 %v67
    %487 = vmatprep.subr.mxu0 %v65
    %488 = vmatpush1.msra.mxu0 %v64
    %489 = vmatprep.subr.mxu0 %v62
    %490 = vmatpush1.msra.mxu0 %v61
    %491 = vmatprep.subr.mxu0 %v59
    %492 = vmatpush1.msra.mxu0 %v58
    %493 = vmatprep.subr.mxu0 0.0
    %494 = vmatpush2.msra.mxu0 0.0
    %495 = vmatprep.subr.mxu0 0.0
    %496 = vmatpush2.msra.mxu0 0.0
    %497 = vmatprep.subr.mxu0 0.0
    %498 = vmatpush2.msra.mxu0 0.0
    %499 = vmatprep.subr.mxu0 0.0
    %500 = vmatpush2.msra.mxu0 0.0
    %501 = vmatprep.subr.mxu0 0.0
    %502 = vmatpush2.msra.mxu0 0.0
    %503 = vmatprep.subr.mxu0 0.0
    %504 = vmatpush2.msra.mxu0 0.0
    %505 = vmatprep.subr.mxu0 0.0
    %506 = vmatpush2.msra.mxu0 0.0
    %507 = vmatprep.subr.mxu0 0.0
    %508 = vmatpush2.msra.mxu0 0.0
    %509 = vmatprep.subr.mxu0 0.0
    %510 = vmatpush2.msra.mxu0 0.0
    %511 = vmatprep.subr.mxu0 0.0
    %512 = vmatpush2.msra.mxu0 0.0
    %513 = vmatprep.subr.mxu0 0.0
    %514 = vmatpush2.msra.mxu0 0.0
    %515 = vmatprep.subr.mxu0 0.0
    %516 = vmatpush2.msra.mxu0 0.0
    %517 = vmatprep.subr.mxu0 0.0
    %518 = vmatpush2.msra.mxu0 0.0
    %519 = vmatprep.subr.mxu0 0.0
    %520 = vmatpush2.msra.mxu0 0.0
    %521 = vmatprep.subr.mxu0 0.0
    %522 = vmatpush2.msra.mxu0 0.0
    %523 = vmatprep.subr.mxu0 0.0
    %524 = vmatpush2.msra.mxu0 0.0
    %525 = vmatprep.mubr.f32.mxu0 0.0
    %526 = vmatmul.mubr.f32.gmra.mxu0 0.0
    %v527 = vpop.f32.mrf.mxu0
    %v528 = vadd.f32 %v161, %v527
    %v529 = vpop.f32.mrf.mxu0
    %v530 = vadd.f32 %v165, %v529
    %531 = vdwg.mxu0
    %532 = vmatprep.subr.mxu0 0.0
    %533 = vmatpush1.msra.mxu0 %v105
    %534 = vmatprep.subr.mxu0 0.0
    %535 = vmatpush1.msra.mxu0 %v102
    %536 = vmatprep.subr.mxu0 0.0
    %537 = vmatpush1.msra.mxu0 %v99
    %538 = vmatprep.subr.mxu0 0.0
    %539 = vmatpush1.msra.mxu0 %v96
    %540 = vmatprep.subr.mxu0 0.0
    %541 = vmatpush1.msra.mxu0 %v93
    %542 = vmatprep.subr.mxu0 0.0
    %543 = vmatpush1.msra.mxu0 %v90
    %544 = vmatprep.subr.mxu0 0.0
    %545 = vmatpush1.msra.mxu0 %v87
    %546 = vmatprep.subr.mxu0 0.0
    %547 = vmatpush1.msra.mxu0 %v84
    %548 = vmatprep.subr.mxu0 0.0
    %549 = vmatpush1.msra.mxu0 %v81
    %550 = vmatprep.subr.mxu0 0.0
    %551 = vmatpush1.msra.mxu0 %v78
    %552 = vmatprep.subr.mxu0 0.0
    %553 = vmatpush1.msra.mxu0 %v75
    %554 = vmatprep.subr.mxu0 0.0
    %555 = vmatpush1.msra.mxu0 %v72
    %556 = vmatprep.subr.mxu0 0.0
    %557 = vmatpush1.msra.mxu0 %v69
    %558 = vmatprep.subr.mxu0 0.0
    %559 = vmatpush1.msra.mxu0 %v66
    %560 = vmatprep.subr.mxu0 0.0
    %561 = vmatpush1.msra.mxu0 %v63
    %562 = vmatprep.subr.mxu0 0.0
    %563 = vmatpush1.msra.mxu0 %v60
    %564 = vmatprep.subr.mxu0 0.0
    %565 = vmatpush2.msra.mxu0 0.0
    %566 = vmatprep.subr.mxu0 0.0
    %567 = vmatpush2.msra.mxu0 0.0
    %568 = vmatprep.subr.mxu0 0.0
    %569 = vmatpush2.msra.mxu0 0.0
    %570 = vmatprep.subr.mxu0 0.0
    %571 = vmatpush2.msra.mxu0 0.0
    %572 = vmatprep.subr.mxu0 0.0
    %573 = vmatpush2.msra.mxu0 0.0
    %574 = vmatprep.subr.mxu0 0.0
    %575 = vmatpush2.msra.mxu0 0.0
    %576 = vmatprep.subr.mxu0 0.0
    %577 = vmatpush2.msra.mxu0 0.0
    %578 = vmatprep.subr.mxu0 0.0
    %579 = vmatpush2.msra.mxu0 0.0
    %580 = vmatprep.subr.mxu0 0.0
    %581 = vmatpush2.msra.mxu0 0.0
    %582 = vmatprep.subr.mxu0 0.0
    %583 = vmatpush2.msra.mxu0 0.0
    %584 = vmatprep.subr.mxu0 0.0
    %585 = vmatpush2.msra.mxu0 0.0
    %586 = vmatprep.subr.mxu0 0.0
    %587 = vmatpush2.msra.mxu0 0.0
    %588 = vmatprep.subr.mxu0 0.0
    %589 = vmatpush2.msra.mxu0 0.0
    %590 = vmatprep.subr.mxu0 0.0
    %591 = vmatpush2.msra.mxu0 0.0
    %592 = vmatprep.subr.mxu0 0.0
    %593 = vmatpush2.msra.mxu0 0.0
    %594 = vmatprep.subr.mxu0 0.0
    %595 = vmatpush2.msra.mxu0 0.0
    %596 = vmatprep.mubr.f32.mxu0 0.0
    %597 = vmatmul.mubr.f32.gmra.mxu0 0.0
    %v598 = vpop.f32.mrf.mxu0
    %v599 = vadd.f32 %v169, %v598
    %v600 = vpop.f32.mrf.mxu0
    %601 = vdwg.mxu0
    %v602 = vadd.f32 %v310, %v528
    %v603 = vadd.f32 %v312, %v530
    %v604 = vxor.u32 %v602, 2147483648
    %v605 = vxor.u32 %v603, 2147483648
    %v606 = vmul.f32 %v604, 1.442695
    %v607 = vpow.pop %v606
    %v608 = vmul.f32 %v605, 1.442695
    %v609 = vpow.pop %v608
    %v610 = vadd.f32 %v607, 1.0
    %v611 = vadd.f32 %v609, 1.0
    %v612 = vrcp.pop %v610
    %v613 = vmul.f32 1.0, %v612
    %v614 = vrcp.pop %v611
    %v615 = vmul.f32 1.0, %v614
    %v616 = vmul.f32 %v613, %v599
    %v617 = vadd.f32 %v423, %v616
    %v618 = vtanh.pop %v617
    %v619 = vsub.f32 1.0, %v615
    %v620 = vmul.f32 %v619, %v618
    %v621 = vmul.f32 %v615, 0.0
    %v622 = vadd.f32 %v620, %v621
    %623 = vmatprep.subr.mxu0 %v104
    %624 = vmatpush1.msra.mxu0 %v103
    %625 = vmatprep.subr.mxu0 %v101
    %626 = vmatpush1.msra.mxu0 %v100
    %627 = vmatprep.subr.mxu0 %v98
    %628 = vmatpush1.msra.mxu0 %v97
    %629 = vmatprep.subr.mxu0 %v95
    %630 = vmatpush1.msra.mxu0 %v94
    %631 = vmatprep.subr.mxu0 %v92
    %632 = vmatpush1.msra.mxu0 %v91
    %633 = vmatprep.subr.mxu0 %v89
    %634 = vmatpush1.msra.mxu0 %v88
    %635 = vmatprep.subr.mxu0 %v86
    %636 = vmatpush1.msra.mxu0 %v85
    %637 = vmatprep.subr.mxu0 %v83
    %638 = vmatpush1.msra.mxu0 %v82
    %639 = vmatprep.subr.mxu0 %v80
    %640 = vmatpush1.msra.mxu0 %v79
    %641 = vmatprep.subr.mxu0 %v77
    %642 = vmatpush1.msra.mxu0 %v76
    %643 = vmatprep.subr.mxu0 %v74
    %644 = vmatpush1.msra.mxu0 %v73
    %645 = vmatprep.subr.mxu0 %v71
    %646 = vmatpush1.msra.mxu0 %v70
    %647 = vmatprep.subr.mxu0 %v68
    %648 = vmatpush1.msra.mxu0 %v67
    %649 = vmatprep.subr.mxu0 %v65
    %650 = vmatpush1.msra.mxu0 %v64
    %651 = vmatprep.subr.mxu0 %v62
    %652 = vmatpush1.msra.mxu0 %v61
    %653 = vmatprep.subr.mxu0 %v59
    %654 = vmatpush1.msra.mxu0 %v58
    %655 = vmatprep.subr.mxu0 0.0
    %656 = vmatpush2.msra.mxu0 0.0
    %657 = vmatprep.subr.mxu0 0.0
    %658 = vmatpush2.msra.mxu0 0.0
    %659 = vmatprep.subr.mxu0 0.0
    %660 = vmatpush2.msra.mxu0 0.0
    %661 = vmatprep.subr.mxu0 0.0
    %662 = vmatpush2.msra.mxu0 0.0
    %663 = vmatprep.subr.mxu0 0.0
    %664 = vmatpush2.msra.mxu0 0.0
    %665 = vmatprep.subr.mxu0 0.0
    %666 = vmatpush2.msra.mxu0 0.0
    %667 = vmatprep.subr.mxu0 0.0
    %668 = vmatpush2.msra.mxu0 0.0
    %669 = vmatprep.subr.mxu0 0.0
    %670 = vmatpush2.msra.mxu0 0.0
    %671 = vmatprep.subr.mxu0 0.0
    %672 = vmatpush2.msra.mxu0 0.0
    %673 = vmatprep.subr.mxu0 0.0
    %674 = vmatpush2.msra.mxu0 0.0
    %675 = vmatprep.subr.mxu0 0.0
    %676 = vmatpush2.msra.mxu0 0.0
    %677 = vmatprep.subr.mxu0 0.0
    %678 = vmatpush2.msra.mxu0 0.0
    %679 = vmatprep.subr.mxu0 0.0
    %680 = vmatpush2.msra.mxu0 0.0
    %681 = vmatprep.subr.mxu0 0.0
    %682 = vmatpush2.msra.mxu0 0.0
    %683 = vmatprep.subr.mxu0 0.0
    %684 = vmatpush2.msra.mxu0 0.0
    %685 = vmatprep.subr.mxu0 0.0
    %686 = vmatpush2.msra.mxu0 0.0
    %687 = vmatprep.mubr.f32.mxu0 0.0
    %688 = vmatmul.mubr.f32.gmra.mxu0 %v622
    %v689 = vpop.f32.mrf.mxu0
    %v690 = vadd.f32 %v161, %v689
    %v691 = vpop.f32.mrf.mxu0
    %v692 = vadd.f32 %v165, %v691
    %693 = vdwg.mxu0
    %694 = vmatprep.subr.mxu0 0.0
    %695 = vmatpush1.msra.mxu0 %v105
    %696 = vmatprep.subr.mxu0 0.0
    %697 = vmatpush1.msra.mxu0 %v102
    %698 = vmatprep.subr.mxu0 0.0
    %699 = vmatpush1.msra.mxu0 %v99
    %700 = vmatprep.subr.mxu0 0.0
    %701 = vmatpush1.msra.mxu0 %v96
    %702 = vmatprep.subr.mxu0 0.0
    %703 = vmatpush1.msra.mxu0 %v93
    %704 = vmatprep.subr.mxu0 0.0
    %705 = vmatpush1.msra.mxu0 %v90
    %706 = vmatprep.subr.mxu0 0.0
    %707 = vmatpush1.msra.mxu0 %v87
    %708 = vmatprep.subr.mxu0 0.0
    %709 = vmatpush1.msra.mxu0 %v84
    %710 = vmatprep.subr.mxu0 0.0
    %711 = vmatpush1.msra.mxu0 %v81
    %712 = vmatprep.subr.mxu0 0.0
    %713 = vmatpush1.msra.mxu0 %v78
    %714 = vmatprep.subr.mxu0 0.0
    %715 = vmatpush1.msra.mxu0 %v75
    %716 = vmatprep.subr.mxu0 0.0
    %717 = vmatpush1.msra.mxu0 %v72
    %718 = vmatprep.subr.mxu0 0.0
    %719 = vmatpush1.msra.mxu0 %v69
    %720 = vmatprep.subr.mxu0 0.0
    %721 = vmatpush1.msra.mxu0 %v66
    %722 = vmatprep.subr.mxu0 0.0
    %723 = vmatpush1.msra.mxu0 %v63
    %724 = vmatprep.subr.mxu0 0.0
    %725 = vmatpush1.msra.mxu0 %v60
    %726 = vmatprep.subr.mxu0 0.0
    %727 = vmatpush2.msra.mxu0 0.0
    %728 = vmatprep.subr.mxu0 0.0
    %729 = vmatpush2.msra.mxu0 0.0
    %730 = vmatprep.subr.mxu0 0.0
    %731 = vmatpush2.msra.mxu0 0.0
    %732 = vmatprep.subr.mxu0 0.0
    %733 = vmatpush2.msra.mxu0 0.0
    %734 = vmatprep.subr.mxu0 0.0
    %735 = vmatpush2.msra.mxu0 0.0
    %736 = vmatprep.subr.mxu0 0.0
    %737 = vmatpush2.msra.mxu0 0.0
    %738 = vmatprep.subr.mxu0 0.0
    %739 = vmatpush2.msra.mxu0 0.0
    %740 = vmatprep.subr.mxu0 0.0
    %741 = vmatpush2.msra.mxu0 0.0
    %742 = vmatprep.subr.mxu0 0.0
    %743 = vmatpush2.msra.mxu0 0.0
    %744 = vmatprep.subr.mxu0 0.0
    %745 = vmatpush2.msra.mxu0 0.0
    %746 = vmatprep.subr.mxu0 0.0
    %747 = vmatpush2.msra.mxu0 0.0
    %748 = vmatprep.subr.mxu0 0.0
    %749 = vmatpush2.msra.mxu0 0.0
    %750 = vmatprep.subr.mxu0 0.0
    %751 = vmatpush2.msra.mxu0 0.0
    %752 = vmatprep.subr.mxu0 0.0
    %753 = vmatpush2.msra.mxu0 0.0
    %754 = vmatprep.subr.mxu0 0.0
    %755 = vmatpush2.msra.mxu0 0.0
    %756 = vmatprep.subr.mxu0 0.0
    %757 = vmatpush2.msra.mxu0 0.0
    %758 = vmatprep.mubr.f32.mxu0 0.0
    %759 = vmatmul.mubr.f32.gmra.mxu0 %v622
    %v760 = vpop.f32.mrf.mxu0
    %v761 = vadd.f32 %v169, %v760
    %v762 = vpop.f32.mrf.mxu0
    %763 = vdwg.mxu0
    %v764 = vadd.f32 %v316, %v690
    %v765 = vadd.f32 %v318, %v692
    %v766 = vxor.u32 %v764, 2147483648
    %v767 = vxor.u32 %v765, 2147483648
    %v768 = vmul.f32 %v766, 1.442695
    %v769 = vpow.pop %v768
    %v770 = vmul.f32 %v767, 1.442695
    %v771 = vpow.pop %v770
    %v772 = vadd.f32 %v769, 1.0
    %v773 = vadd.f32 %v771, 1.0
    %v774 = vrcp.pop %v772
    %v775 = vmul.f32 1.0, %v774
    %v776 = vrcp.pop %v773
    %v777 = vmul.f32 1.0, %v776
    %v778 = vmul.f32 %v775, %v761
    %v779 = vadd.f32 %v428, %v778
    %v780 = vtanh.pop %v779
    %v781 = vsub.f32 1.0, %v777
    %v782 = vmul.f32 %v781, %v780
    %v783 = vmul.f32 %v777, %v622
    %v784 = vadd.f32 %v782, %v783
    %785 = vmatprep.subr.mxu0 %v104
    %786 = vmatpush1.msra.mxu0 %v103
    %787 = vmatprep.subr.mxu0 %v101
    %788 = vmatpush1.msra.mxu0 %v100
    %789 = vmatprep.subr.mxu0 %v98
    %790 = vmatpush1.msra.mxu0 %v97
    %791 = vmatprep.subr.mxu0 %v95
    %792 = vmatpush1.msra.mxu0 %v94
    %793 = vmatprep.subr.mxu0 %v92
    %794 = vmatpush1.msra.mxu0 %v91
    %795 = vmatprep.subr.mxu0 %v89
    %796 = vmatpush1.msra.mxu0 %v88
    %797 = vmatprep.subr.mxu0 %v86
    %798 = vmatpush1.msra.mxu0 %v85
    %799 = vmatprep.subr.mxu0 %v83
    %800 = vmatpush1.msra.mxu0 %v82
    %801 = vmatprep.subr.mxu0 %v80
    %802 = vmatpush1.msra.mxu0 %v79
    %803 = vmatprep.subr.mxu0 %v77
    %804 = vmatpush1.msra.mxu0 %v76
    %805 = vmatprep.subr.mxu0 %v74
    %806 = vmatpush1.msra.mxu0 %v73
    %807 = vmatprep.subr.mxu0 %v71
    %808 = vmatpush1.msra.mxu0 %v70
    %809 = vmatprep.subr.mxu0 %v68
    %810 = vmatpush1.msra.mxu0 %v67
    %811 = vmatprep.subr.mxu0 %v65
    %812 = vmatpush1.msra.mxu0 %v64
    %813 = vmatprep.subr.mxu0 %v62
    %814 = vmatpush1.msra.mxu0 %v61
    %815 = vmatprep.subr.mxu0 %v59
    %816 = vmatpush1.msra.mxu0 %v58
    %817 = vmatprep.subr.mxu0 0.0
    %818 = vmatpush2.msra.mxu0 0.0
    %819 = vmatprep.subr.mxu0 0.0
    %820 = vmatpush2.msra.mxu0 0.0
    %821 = vmatprep.subr.mxu0 0.0
    %822 = vmatpush2.msra.mxu0 0.0
    %823 = vmatprep.subr.mxu0 0.0
    %824 = vmatpush2.msra.mxu0 0.0
    %825 = vmatprep.subr.mxu0 0.0
    %826 = vmatpush2.msra.mxu0 0.0
    %827 = vmatprep.subr.mxu0 0.0
    %828 = vmatpush2.msra.mxu0 0.0
    %829 = vmatprep.subr.mxu0 0.0
    %830 = vmatpush2.msra.mxu0 0.0
    %831 = vmatprep.subr.mxu0 0.0
    %832 = vmatpush2.msra.mxu0 0.0
    %833 = vmatprep.subr.mxu0 0.0
    %834 = vmatpush2.msra.mxu0 0.0
    %835 = vmatprep.subr.mxu0 0.0
    %836 = vmatpush2.msra.mxu0 0.0
    %837 = vmatprep.subr.mxu0 0.0
    %838 = vmatpush2.msra.mxu0 0.0
    %839 = vmatprep.subr.mxu0 0.0
    %840 = vmatpush2.msra.mxu0 0.0
    %841 = vmatprep.subr.mxu0 0.0
    %842 = vmatpush2.msra.mxu0 0.0
    %843 = vmatprep.subr.mxu0 0.0
    %844 = vmatpush2.msra.mxu0 0.0
    %845 = vmatprep.subr.mxu0 0.0
    %846 = vmatpush2.msra.mxu0 0.0
    %847 = vmatprep.subr.mxu0 0.0
    %848 = vmatpush2.msra.mxu0 0.0
    %849 = vmatprep.mubr.f32.mxu0 0.0
    %850 = vmatmul.mubr.f32.gmra.mxu0 %v784
    %v851 = vpop.f32.mrf.mxu0
    %v852 = vadd.f32 %v161, %v851
    %v853 = vpop.f32.mrf.mxu0
    %v854 = vadd.f32 %v165, %v853
    %855 = vdwg.mxu0
    %856 = vmatprep.subr.mxu0 0.0
    %857 = vmatpush1.msra.mxu0 %v105
    %858 = vmatprep.subr.mxu0 0.0
    %859 = vmatpush1.msra.mxu0 %v102
    %860 = vmatprep.subr.mxu0 0.0
    %861 = vmatpush1.msra.mxu0 %v99
    %862 = vmatprep.subr.mxu0 0.0
    %863 = vmatpush1.msra.mxu0 %v96
    %864 = vmatprep.subr.mxu0 0.0
    %865 = vmatpush1.msra.mxu0 %v93
    %866 = vmatprep.subr.mxu0 0.0
    %867 = vmatpush1.msra.mxu0 %v90
    %868 = vmatprep.subr.mxu0 0.0
    %869 = vmatpush1.msra.mxu0 %v87
    %870 = vmatprep.subr.mxu0 0.0
    %871 = vmatpush1.msra.mxu0 %v84
    %872 = vmatprep.subr.mxu0 0.0
    %873 = vmatpush1.msra.mxu0 %v81
    %874 = vmatprep.subr.mxu0 0.0
    %875 = vmatpush1.msra.mxu0 %v78
    %876 = vmatprep.subr.mxu0 0.0
    %877 = vmatpush1.msra.mxu0 %v75
    %878 = vmatprep.subr.mxu0 0.0
    %879 = vmatpush1.msra.mxu0 %v72
    %880 = vmatprep.subr.mxu0 0.0
    %881 = vmatpush1.msra.mxu0 %v69
    %882 = vmatprep.subr.mxu0 0.0
    %883 = vmatpush1.msra.mxu0 %v66
    %884 = vmatprep.subr.mxu0 0.0
    %885 = vmatpush1.msra.mxu0 %v63
    %886 = vmatprep.subr.mxu0 0.0
    %887 = vmatpush1.msra.mxu0 %v60
    %888 = vmatprep.subr.mxu0 0.0
    %889 = vmatpush2.msra.mxu0 0.0
    %890 = vmatprep.subr.mxu0 0.0
    %891 = vmatpush2.msra.mxu0 0.0
    %892 = vmatprep.subr.mxu0 0.0
    %893 = vmatpush2.msra.mxu0 0.0
    %894 = vmatprep.subr.mxu0 0.0
    %895 = vmatpush2.msra.mxu0 0.0
    %896 = vmatprep.subr.mxu0 0.0
    %897 = vmatpush2.msra.mxu0 0.0
    %898 = vmatprep.subr.mxu0 0.0
    %899 = vmatpush2.msra.mxu0 0.0
    %900 = vmatprep.subr.mxu0 0.0
    %901 = vmatpush2.msra.mxu0 0.0
    %902 = vmatprep.subr.mxu0 0.0
    %903 = vmatpush2.msra.mxu0 0.0
    %904 = vmatprep.subr.mxu0 0.0
    %905 = vmatpush2.msra.mxu0 0.0
    %906 = vmatprep.subr.mxu0 0.0
    %907 = vmatpush2.msra.mxu0 0.0
    %908 = vmatprep.subr.mxu0 0.0
    %909 = vmatpush2.msra.mxu0 0.0
    %910 = vmatprep.subr.mxu0 0.0
    %911 = vmatpush2.msra.mxu0 0.0
    %912 = vmatprep.subr.mxu0 0.0
    %913 = vmatpush2.msra.mxu0 0.0
    %914 = vmatprep.subr.mxu0 0.0
    %915 = vmatpush2.msra.mxu0 0.0
    %916 = vmatprep.subr.mxu0 0.0
    %917 = vmatpush2.msra.mxu0 0.0
    %918 = vmatprep.subr.mxu0 0.0
    %919 = vmatpush2.msra.mxu0 0.0
    %920 = vmatprep.mubr.f32.mxu0 0.0
    %921 = vmatmul.mubr.f32.gmra.mxu0 %v784
    %v922 = vpop.f32.mrf.mxu0
    %v923 = vadd.f32 %v169, %v922
    %v924 = vpop.f32.mrf.mxu0
    %925 = vdwg.mxu0
    %v926 = vadd.f32 %v322, %v852
    %v927 = vadd.f32 %v324, %v854
    %v928 = vxor.u32 %v926, 2147483648
    %v929 = vxor.u32 %v927, 2147483648
    %v930 = vmul.f32 %v928, 1.442695
    %v931 = vpow.pop %v930
    %v932 = vmul.f32 %v929, 1.442695
    %v933 = vpow.pop %v932
    %v934 = vadd.f32 %v931, 1.0
    %v935 = vadd.f32 %v933, 1.0
    %v936 = vrcp.pop %v934
    %v937 = vmul.f32 1.0, %v936
    %v938 = vrcp.pop %v935
    %v939 = vmul.f32 1.0, %v938
    %v940 = vmul.f32 %v937, %v923
    %v941 = vadd.f32 %v433, %v940
    %v942 = vtanh.pop %v941
    %v943 = vsub.f32 1.0, %v939
    %v944 = vmul.f32 %v943, %v942
    %v945 = vmul.f32 %v939, %v784
    %v946 = vadd.f32 %v944, %v945
    %947 = vmatprep.subr.mxu0 %v104
    %948 = vmatpush1.msra.mxu0 %v103
    %949 = vmatprep.subr.mxu0 %v101
    %950 = vmatpush1.msra.mxu0 %v100
    %951 = vmatprep.subr.mxu0 %v98
    %952 = vmatpush1.msra.mxu0 %v97
    %953 = vmatprep.subr.mxu0 %v95
    %954 = vmatpush1.msra.mxu0 %v94
    %955 = vmatprep.subr.mxu0 %v92
    %956 = vmatpush1.msra.mxu0 %v91
    %957 = vmatprep.subr.mxu0 %v89
    %958 = vmatpush1.msra.mxu0 %v88
    %959 = vmatprep.subr.mxu0 %v86
    %960 = vmatpush1.msra.mxu0 %v85
    %961 = vmatprep.subr.mxu0 %v83
    %962 = vmatpush1.msra.mxu0 %v82
    %963 = vmatprep.subr.mxu0 %v80
    %964 = vmatpush1.msra.mxu0 %v79
    %965 = vmatprep.subr.mxu0 %v77
    %966 = vmatpush1.msra.mxu0 %v76
    %967 = vmatprep.subr.mxu0 %v74
    %968 = vmatpush1.msra.mxu0 %v73
    %969 = vmatprep.subr.mxu0 %v71
    %970 = vmatpush1.msra.mxu0 %v70
    %971 = vmatprep.subr.mxu0 %v68
    %972 = vmatpush1.msra.mxu0 %v67
    %973 = vmatprep.subr.mxu0 %v65
    %974 = vmatpush1.msra.mxu0 %v64
    %975 = vmatprep.subr.mxu0 %v62
    %976 = vmatpush1.msra.mxu0 %v61
    %977 = vmatprep.subr.mxu0 %v59
    %978 = vmatpush1.msra.mxu0 %v58
    %979 = vmatprep.subr.mxu0 0.0
    %980 = vmatpush2.msra.mxu0 0.0
    %981 = vmatprep.subr.mxu0 0.0
    %982 = vmatpush2.msra.mxu0 0.0
    %983 = vmatprep.subr.mxu0 0.0
    %984 = vmatpush2.msra.mxu0 0.0
    %985 = vmatprep.subr.mxu0 0.0
    %986 = vmatpush2.msra.mxu0 0.0
    %987 = vmatprep.subr.mxu0 0.0
    %988 = vmatpush2.msra.mxu0 0.0
    %989 = vmatprep.subr.mxu0 0.0
    %990 = vmatpush2.msra.mxu0 0.0
    %991 = vmatprep.subr.mxu0 0.0
    %992 = vmatpush2.msra.mxu0 0.0
    %993 = vmatprep.subr.mxu0 0.0
    %994 = vmatpush2.msra.mxu0 0.0
    %995 = vmatprep.subr.mxu0 0.0
    %996 = vmatpush2.msra.mxu0 0.0
    %997 = vmatprep.subr.mxu0 0.0
    %998 = vmatpush2.msra.mxu0 0.0
    %999 = vmatprep.subr.mxu0 0.0
    %1000 = vmatpush2.msra.mxu0 0.0
    %1001 = vmatprep.subr.mxu0 0.0
    %1002 = vmatpush2.msra.mxu0 0.0
    %1003 = vmatprep.subr.mxu0 0.0
    %1004 = vmatpush2.msra.mxu0 0.0
    %1005 = vmatprep.subr.mxu0 0.0
    %1006 = vmatpush2.msra.mxu0 0.0
    %1007 = vmatprep.subr.mxu0 0.0
    %1008 = vmatpush2.msra.mxu0 0.0
    %1009 = vmatprep.subr.mxu0 0.0
    %1010 = vmatpush2.msra.mxu0 0.0
    %1011 = vmatprep.mubr.f32.mxu0 0.0
    %1012 = vmatmul.mubr.f32.gmra.mxu0 %v946
    %v1013 = vpop.f32.mrf.mxu0
    %v1014 = vadd.f32 %v161, %v1013
    %v1015 = vpop.f32.mrf.mxu0
    %v1016 = vadd.f32 %v165, %v1015
    %1017 = vdwg.mxu0
    %1018 = vmatprep.subr.mxu0 0.0
    %1019 = vmatpush1.msra.mxu0 %v105
    %1020 = vmatprep.subr.mxu0 0.0
    %1021 = vmatpush1.msra.mxu0 %v102
    %1022 = vmatprep.subr.mxu0 0.0
    %1023 = vmatpush1.msra.mxu0 %v99
    %1024 = vmatprep.subr.mxu0 0.0
    %1025 = vmatpush1.msra.mxu0 %v96
    %1026 = vmatprep.subr.mxu0 0.0
    %1027 = vmatpush1.msra.mxu0 %v93
    %1028 = vmatprep.subr.mxu0 0.0
    %1029 = vmatpush1.msra.mxu0 %v90
    %1030 = vmatprep.subr.mxu0 0.0
    %1031 = vmatpush1.msra.mxu0 %v87
    %1032 = vmatprep.subr.mxu0 0.0
    %1033 = vmatpush1.msra.mxu0 %v84
    %1034 = vmatprep.subr.mxu0 0.0
    %1035 = vmatpush1.msra.mxu0 %v81
    %1036 = vmatprep.subr.mxu0 0.0
    %1037 = vmatpush1.msra.mxu0 %v78
    %1038 = vmatprep.subr.mxu0 0.0
    %1039 = vmatpush1.msra.mxu0 %v75
    %1040 = vmatprep.subr.mxu0 0.0
    %1041 = vmatpush1.msra.mxu0 %v72
    %1042 = vmatprep.subr.mxu0 0.0
    %1043 = vmatpush1.msra.mxu0 %v69
    %1044 = vmatprep.subr.mxu0 0.0
    %1045 = vmatpush1.msra.mxu0 %v66
    %1046 = vmatprep.subr.mxu0 0.0
    %1047 = vmatpush1.msra.mxu0 %v63
    %1048 = vmatprep.subr.mxu0 0.0
    %1049 = vmatpush1.msra.mxu0 %v60
    %1050 = vmatprep.subr.mxu0 0.0
    %1051 = vmatpush2.msra.mxu0 0.0
    %1052 = vmatprep.subr.mxu0 0.0
    %1053 = vmatpush2.msra.mxu0 0.0
    %1054 = vmatprep.subr.mxu0 0.0
    %1055 = vmatpush2.msra.mxu0 0.0
    %1056 = vmatprep.subr.mxu0 0.0
    %1057 = vmatpush2.msra.mxu0 0.0
    %1058 = vmatprep.subr.mxu0 0.0
    %1059 = vmatpush2.msra.mxu0 0.0
    %1060 = vmatprep.subr.mxu0 0.0
    %1061 = vmatpush2.msra.mxu0 0.0
    %1062 = vmatprep.subr.mxu0 0.0
    %1063 = vmatpush2.msra.mxu0 0.0
    %1064 = vmatprep.subr.mxu0 0.0
    %1065 = vmatpush2.msra.mxu0 0.0
    %1066 = vmatprep.subr.mxu0 0.0
    %1067 = vmatpush2.msra.mxu0 0.0
    %1068 = vmatprep.subr.mxu0 0.0
    %1069 = vmatpush2.msra.mxu0 0.0
    %1070 = vmatprep.subr.mxu0 0.0
    %1071 = vmatpush2.msra.mxu0 0.0
    %1072 = vmatprep.subr.mxu0 0.0
    %1073 = vmatpush2.msra.mxu0 0.0
    %1074 = vmatprep.subr.mxu0 0.0
    %1075 = vmatpush2.msra.mxu0 0.0
    %1076 = vmatprep.subr.mxu0 0.0
    %1077 = vmatpush2.msra.mxu0 0.0
    %1078 = vmatprep.subr.mxu0 0.0
    %1079 = vmatpush2.msra.mxu0 0.0
    %1080 = vmatprep.subr.mxu0 0.0
    %1081 = vmatpush2.msra.mxu0 0.0
    %1082 = vmatprep.mubr.f32.mxu0 0.0
    %1083 = vmatmul.mubr.f32.gmra.mxu0 %v946
    %v1084 = vpop.f32.mrf.mxu0
    %v1085 = vadd.f32 %v169, %v1084
    %v1086 = vpop.f32.mrf.mxu0
    %1087 = vdwg.mxu0
    %v1088 = vadd.f32 %v328, %v1014
    %v1089 = vadd.f32 %v330, %v1016
    %v1090 = vxor.u32 %v1088, 2147483648
    %v1091 = vxor.u32 %v1089, 2147483648
    %v1092 = vmul.f32 %v1090, 1.442695
    %v1093 = vpow.pop %v1092
    %v1094 = vmul.f32 %v1091, 1.442695
    %v1095 = vpow.pop %v1094
    %v1096 = vadd.f32 %v1093, 1.0
    %v1097 = vadd.f32 %v1095, 1.0
    %v1098 = vrcp.pop %v1096
    %v1099 = vmul.f32 1.0, %v1098
    %v1100 = vrcp.pop %v1097
    %v1101 = vmul.f32 1.0, %v1100
    %v1102 = vmul.f32 %v1099, %v1085
    %v1103 = vadd.f32 %v438, %v1102
    %v1104 = vtanh.pop %v1103
    %v1105 = vsub.f32 1.0, %v1101
    %v1106 = vmul.f32 %v1105, %v1104
    %v1107 = vmul.f32 %v1101, %v946
    %v1108 = vadd.f32 %v1106, %v1107
    %1109 = vmatprep.subr.mxu0 %v104
    %1110 = vmatpush1.msra.mxu0 %v103
    %1111 = vmatprep.subr.mxu0 %v101
    %1112 = vmatpush1.msra.mxu0 %v100
    %1113 = vmatprep.subr.mxu0 %v98
    %1114 = vmatpush1.msra.mxu0 %v97
    %1115 = vmatprep.subr.mxu0 %v95
    %1116 = vmatpush1.msra.mxu0 %v94
    %1117 = vmatprep.subr.mxu0 %v92
    %1118 = vmatpush1.msra.mxu0 %v91
    %1119 = vmatprep.subr.mxu0 %v89
    %1120 = vmatpush1.msra.mxu0 %v88
    %1121 = vmatprep.subr.mxu0 %v86
    %1122 = vmatpush1.msra.mxu0 %v85
    %1123 = vmatprep.subr.mxu0 %v83
    %1124 = vmatpush1.msra.mxu0 %v82
    %1125 = vmatprep.subr.mxu0 %v80
    %1126 = vmatpush1.msra.mxu0 %v79
    %1127 = vmatprep.subr.mxu0 %v77
    %1128 = vmatpush1.msra.mxu0 %v76
    %1129 = vmatprep.subr.mxu0 %v74
    %1130 = vmatpush1.msra.mxu0 %v73
    %1131 = vmatprep.subr.mxu0 %v71
    %1132 = vmatpush1.msra.mxu0 %v70
    %1133 = vmatprep.subr.mxu0 %v68
    %1134 = vmatpush1.msra.mxu0 %v67
    %1135 = vmatprep.subr.mxu0 %v65
    %1136 = vmatpush1.msra.mxu0 %v64
    %1137 = vmatprep.subr.mxu0 %v62
    %1138 = vmatpush1.msra.mxu0 %v61
    %1139 = vmatprep.subr.mxu0 %v59
    %1140 = vmatpush1.msra.mxu0 %v58
    %1141 = vmatprep.subr.mxu0 0.0
    %1142 = vmatpush2.msra.mxu0 0.0
    %1143 = vmatprep.subr.mxu0 0.0
    %1144 = vmatpush2.msra.mxu0 0.0
    %1145 = vmatprep.subr.mxu0 0.0
    %1146 = vmatpush2.msra.mxu0 0.0
    %1147 = vmatprep.subr.mxu0 0.0
    %1148 = vmatpush2.msra.mxu0 0.0
    %1149 = vmatprep.subr.mxu0 0.0
    %1150 = vmatpush2.msra.mxu0 0.0
    %1151 = vmatprep.subr.mxu0 0.0
    %1152 = vmatpush2.msra.mxu0 0.0
    %1153 = vmatprep.subr.mxu0 0.0
    %1154 = vmatpush2.msra.mxu0 0.0
    %1155 = vmatprep.subr.mxu0 0.0
    %1156 = vmatpush2.msra.mxu0 0.0
    %1157 = vmatprep.subr.mxu0 0.0
    %1158 = vmatpush2.msra.mxu0 0.0
    %1159 = vmatprep.subr.mxu0 0.0
    %1160 = vmatpush2.msra.mxu0 0.0
    %1161 = vmatprep.subr.mxu0 0.0
    %1162 = vmatpush2.msra.mxu0 0.0
    %1163 = vmatprep.subr.mxu0 0.0
    %1164 = vmatpush2.msra.mxu0 0.0
    %1165 = vmatprep.subr.mxu0 0.0
    %1166 = vmatpush2.msra.mxu0 0.0
    %1167 = vmatprep.subr.mxu0 0.0
    %1168 = vmatpush2.msra.mxu0 0.0
    %1169 = vmatprep.subr.mxu0 0.0
    %1170 = vmatpush2.msra.mxu0 0.0
    %1171 = vmatprep.subr.mxu0 0.0
    %1172 = vmatpush2.msra.mxu0 0.0
    %1173 = vmatprep.mubr.f32.mxu0 0.0
    %1174 = vmatmul.mubr.f32.gmra.mxu0 %v1108
    %v1175 = vpop.f32.mrf.mxu0
    %v1176 = vadd.f32 %v161, %v1175
    %v1177 = vpop.f32.mrf.mxu0
    %v1178 = vadd.f32 %v165, %v1177
    %1179 = vdwg.mxu0
    %1180 = vmatprep.subr.mxu0 0.0
    %1181 = vmatpush1.msra.mxu0 %v105
    %1182 = vmatprep.subr.mxu0 0.0
    %1183 = vmatpush1.msra.mxu0 %v102
    %1184 = vmatprep.subr.mxu0 0.0
    %1185 = vmatpush1.msra.mxu0 %v99
    %1186 = vmatprep.subr.mxu0 0.0
    %1187 = vmatpush1.msra.mxu0 %v96
    %1188 = vmatprep.subr.mxu0 0.0
    %1189 = vmatpush1.msra.mxu0 %v93
    %1190 = vmatprep.subr.mxu0 0.0
    %1191 = vmatpush1.msra.mxu0 %v90
    %1192 = vmatprep.subr.mxu0 0.0
    %1193 = vmatpush1.msra.mxu0 %v87
    %1194 = vmatprep.subr.mxu0 0.0
    %1195 = vmatpush1.msra.mxu0 %v84
    %1196 = vmatprep.subr.mxu0 0.0
    %1197 = vmatpush1.msra.mxu0 %v81
    %1198 = vmatprep.subr.mxu0 0.0
    %1199 = vmatpush1.msra.mxu0 %v78
    %1200 = vmatprep.subr.mxu0 0.0
    %1201 = vmatpush1.msra.mxu0 %v75
    %1202 = vmatprep.subr.mxu0 0.0
    %1203 = vmatpush1.msra.mxu0 %v72
    %1204 = vmatprep.subr.mxu0 0.0
    %1205 = vmatpush1.msra.mxu0 %v69
    %1206 = vmatprep.subr.mxu0 0.0
    %1207 = vmatpush1.msra.mxu0 %v66
    %1208 = vmatprep.subr.mxu0 0.0
    %1209 = vmatpush1.msra.mxu0 %v63
    %1210 = vmatprep.subr.mxu0 0.0
    %1211 = vmatpush1.msra.mxu0 %v60
    %1212 = vmatprep.subr.mxu0 0.0
    %1213 = vmatpush2.msra.mxu0 0.0
    %1214 = vmatprep.subr.mxu0 0.0
    %1215 = vmatpush2.msra.mxu0 0.0
    %1216 = vmatprep.subr.mxu0 0.0
    %1217 = vmatpush2.msra.mxu0 0.0
    %1218 = vmatprep.subr.mxu0 0.0
    %1219 = vmatpush2.msra.mxu0 0.0
    %1220 = vmatprep.subr.mxu0 0.0
    %1221 = vmatpush2.msra.mxu0 0.0
    %1222 = vmatprep.subr.mxu0 0.0
    %1223 = vmatpush2.msra.mxu0 0.0
    %1224 = vmatprep.subr.mxu0 0.0
    %1225 = vmatpush2.msra.mxu0 0.0
    %1226 = vmatprep.subr.mxu0 0.0
    %1227 = vmatpush2.msra.mxu0 0.0
    %1228 = vmatprep.subr.mxu0 0.0
    %1229 = vmatpush2.msra.mxu0 0.0
    %1230 = vmatprep.subr.mxu0 0.0
    %1231 = vmatpush2.msra.mxu0 0.0
    %1232 = vmatprep.subr.mxu0 0.0
    %1233 = vmatpush2.msra.mxu0 0.0
    %1234 = vmatprep.subr.mxu0 0.0
    %1235 = vmatpush2.msra.mxu0 0.0
    %1236 = vmatprep.subr.mxu0 0.0
    %1237 = vmatpush2.msra.mxu0 0.0
    %1238 = vmatprep.subr.mxu0 0.0
    %1239 = vmatpush2.msra.mxu0 0.0
    %1240 = vmatprep.subr.mxu0 0.0
    %1241 = vmatpush2.msra.mxu0 0.0
    %1242 = vmatprep.subr.mxu0 0.0
    %1243 = vmatpush2.msra.mxu0 0.0
    %1244 = vmatprep.mubr.f32.mxu0 0.0
    %1245 = vmatmul.mubr.f32.gmra.mxu0 %v1108
    %v1246 = vpop.f32.mrf.mxu0
    %v1247 = vadd.f32 %v169, %v1246
    %v1248 = vpop.f32.mrf.mxu0
    %1249 = vdwg.mxu0
    %v1250 = vadd.f32 %v334, %v1176
    %v1251 = vadd.f32 %v336, %v1178
    %v1252 = vxor.u32 %v1250, 2147483648
    %v1253 = vxor.u32 %v1251, 2147483648
    %v1254 = vmul.f32 %v1252, 1.442695
    %v1255 = vpow.pop %v1254
    %v1256 = vmul.f32 %v1253, 1.442695
    %v1257 = vpow.pop %v1256
    %v1258 = vadd.f32 %v1255, 1.0
    %v1259 = vadd.f32 %v1257, 1.0
    %v1260 = vrcp.pop %v1258
    %v1261 = vmul.f32 1.0, %v1260
    %v1262 = vrcp.pop %v1259
    %v1263 = vmul.f32 1.0, %v1262
    %v1264 = vmul.f32 %v1261, %v1247
    %v1265 = vadd.f32 %v443, %v1264
    %v1266 = vtanh.pop %v1265
    %v1267 = vsub.f32 1.0, %v1263
    %v1268 = vmul.f32 %v1267, %v1266
    %v1269 = vmul.f32 %v1263, %v1108
    %v1270 = vadd.f32 %v1268, %v1269
    %1271 = vmatprep.subr.mxu0 %v104
    %1272 = vmatpush1.msra.mxu0 %v103
    %1273 = vmatprep.subr.mxu0 %v101
    %1274 = vmatpush1.msra.mxu0 %v100
    %1275 = vmatprep.subr.mxu0 %v98
    %1276 = vmatpush1.msra.mxu0 %v97
    %1277 = vmatprep.subr.mxu0 %v95
    %1278 = vmatpush1.msra.mxu0 %v94
    %1279 = vmatprep.subr.mxu0 %v92
    %1280 = vmatpush1.msra.mxu0 %v91
    %1281 = vmatprep.subr.mxu0 %v89
    %1282 = vmatpush1.msra.mxu0 %v88
    %1283 = vmatprep.subr.mxu0 %v86
    %1284 = vmatpush1.msra.mxu0 %v85
    %1285 = vmatprep.subr.mxu0 %v83
    %1286 = vmatpush1.msra.mxu0 %v82
    %1287 = vmatprep.subr.mxu0 %v80
    %1288 = vmatpush1.msra.mxu0 %v79
    %1289 = vmatprep.subr.mxu0 %v77
    %1290 = vmatpush1.msra.mxu0 %v76
    %1291 = vmatprep.subr.mxu0 %v74
    %1292 = vmatpush1.msra.mxu0 %v73
    %1293 = vmatprep.subr.mxu0 %v71
    %1294 = vmatpush1.msra.mxu0 %v70
    %1295 = vmatprep.subr.mxu0 %v68
    %1296 = vmatpush1.msra.mxu0 %v67
    %1297 = vmatprep.subr.mxu0 %v65
    %1298 = vmatpush1.msra.mxu0 %v64
    %1299 = vmatprep.subr.mxu0 %v62
    %1300 = vmatpush1.msra.mxu0 %v61
    %1301 = vmatprep.subr.mxu0 %v59
    %1302 = vmatpush1.msra.mxu0 %v58
    %1303 = vmatprep.subr.mxu0 0.0
    %1304 = vmatpush2.msra.mxu0 0.0
    %1305 = vmatprep.subr.mxu0 0.0
    %1306 = vmatpush2.msra.mxu0 0.0
    %1307 = vmatprep.subr.mxu0 0.0
    %1308 = vmatpush2.msra.mxu0 0.0
    %1309 = vmatprep.subr.mxu0 0.0
    %1310 = vmatpush2.msra.mxu0 0.0
    %1311 = vmatprep.subr.mxu0 0.0
    %1312 = vmatpush2.msra.mxu0 0.0
    %1313 = vmatprep.subr.mxu0 0.0
    %1314 = vmatpush2.msra.mxu0 0.0
    %1315 = vmatprep.subr.mxu0 0.0
    %1316 = vmatpush2.msra.mxu0 0.0
    %1317 = vmatprep.subr.mxu0 0.0
    %1318 = vmatpush2.msra.mxu0 0.0
    %1319 = vmatprep.subr.mxu0 0.0
    %1320 = vmatpush2.msra.mxu0 0.0
    %1321 = vmatprep.subr.mxu0 0.0
    %1322 = vmatpush2.msra.mxu0 0.0
    %1323 = vmatprep.subr.mxu0 0.0
    %1324 = vmatpush2.msra.mxu0 0.0
    %1325 = vmatprep.subr.mxu0 0.0
    %1326 = vmatpush2.msra.mxu0 0.0
    %1327 = vmatprep.subr.mxu0 0.0
    %1328 = vmatpush2.msra.mxu0 0.0
    %1329 = vmatprep.subr.mxu0 0.0
    %1330 = vmatpush2.msra.mxu0 0.0
    %1331 = vmatprep.subr.mxu0 0.0
    %1332 = vmatpush2.msra.mxu0 0.0
    %1333 = vmatprep.subr.mxu0 0.0
    %1334 = vmatpush2.msra.mxu0 0.0
    %1335 = vmatprep.mubr.f32.mxu0 0.0
    %1336 = vmatmul.mubr.f32.gmra.mxu0 %v1270
    %v1337 = vpop.f32.mrf.mxu0
    %v1338 = vadd.f32 %v161, %v1337
    %v1339 = vpop.f32.mrf.mxu0
    %v1340 = vadd.f32 %v165, %v1339
    %1341 = vdwg.mxu0
    %1342 = vmatprep.subr.mxu0 0.0
    %1343 = vmatpush1.msra.mxu0 %v105
    %1344 = vmatprep.subr.mxu0 0.0
    %1345 = vmatpush1.msra.mxu0 %v102
    %1346 = vmatprep.subr.mxu0 0.0
    %1347 = vmatpush1.msra.mxu0 %v99
    %1348 = vmatprep.subr.mxu0 0.0
    %1349 = vmatpush1.msra.mxu0 %v96
    %1350 = vmatprep.subr.mxu0 0.0
    %1351 = vmatpush1.msra.mxu0 %v93
    %1352 = vmatprep.subr.mxu0 0.0
    %1353 = vmatpush1.msra.mxu0 %v90
    %1354 = vmatprep.subr.mxu0 0.0
    %1355 = vmatpush1.msra.mxu0 %v87
    %1356 = vmatprep.subr.mxu0 0.0
    %1357 = vmatpush1.msra.mxu0 %v84
    %1358 = vmatprep.subr.mxu0 0.0
    %1359 = vmatpush1.msra.mxu0 %v81
    %1360 = vmatprep.subr.mxu0 0.0
    %1361 = vmatpush1.msra.mxu0 %v78
    %1362 = vmatprep.subr.mxu0 0.0
    %1363 = vmatpush1.msra.mxu0 %v75
    %1364 = vmatprep.subr.mxu0 0.0
    %1365 = vmatpush1.msra.mxu0 %v72
    %1366 = vmatprep.subr.mxu0 0.0
    %1367 = vmatpush1.msra.mxu0 %v69
    %1368 = vmatprep.subr.mxu0 0.0
    %1369 = vmatpush1.msra.mxu0 %v66
    %1370 = vmatprep.subr.mxu0 0.0
    %1371 = vmatpush1.msra.mxu0 %v63
    %1372 = vmatprep.subr.mxu0 0.0
    %1373 = vmatpush1.msra.mxu0 %v60
    %1374 = vmatprep.subr.mxu0 0.0
    %1375 = vmatpush2.msra.mxu0 0.0
    %1376 = vmatprep.subr.mxu0 0.0
    %1377 = vmatpush2.msra.mxu0 0.0
    %1378 = vmatprep.subr.mxu0 0.0
    %1379 = vmatpush2.msra.mxu0 0.0
    %1380 = vmatprep.subr.mxu0 0.0
    %1381 = vmatpush2.msra.mxu0 0.0
    %1382 = vmatprep.subr.mxu0 0.0
    %1383 = vmatpush2.msra.mxu0 0.0
    %1384 = vmatprep.subr.mxu0 0.0
    %1385 = vmatpush2.msra.mxu0 0.0
    %1386 = vmatprep.subr.mxu0 0.0
    %1387 = vmatpush2.msra.mxu0 0.0
    %1388 = vmatprep.subr.mxu0 0.0
    %1389 = vmatpush2.msra.mxu0 0.0
    %1390 = vmatprep.subr.mxu0 0.0
    %1391 = vmatpush2.msra.mxu0 0.0
    %1392 = vmatprep.subr.mxu0 0.0
    %1393 = vmatpush2.msra.mxu0 0.0
    %1394 = vmatprep.subr.mxu0 0.0
    %1395 = vmatpush2.msra.mxu0 0.0
    %1396 = vmatprep.subr.mxu0 0.0
    %1397 = vmatpush2.msra.mxu0 0.0
    %1398 = vmatprep.subr.mxu0 0.0
    %1399 = vmatpush2.msra.mxu0 0.0
    %1400 = vmatprep.subr.mxu0 0.0
    %1401 = vmatpush2.msra.mxu0 0.0
    %1402 = vmatprep.subr.mxu0 0.0
    %1403 = vmatpush2.msra.mxu0 0.0
    %1404 = vmatprep.subr.mxu0 0.0
    %1405 = vmatpush2.msra.mxu0 0.0
    %1406 = vmatprep.mubr.f32.mxu0 0.0
    %1407 = vmatmul.mubr.f32.gmra.mxu0 %v1270
    %v1408 = vpop.f32.mrf.mxu0
    %v1409 = vadd.f32 %v169, %v1408
    %v1410 = vpop.f32.mrf.mxu0
    %1411 = vdwg.mxu0
    %v1412 = vadd.f32 %v340, %v1338
    %v1413 = vadd.f32 %v342, %v1340
    %v1414 = vxor.u32 %v1412, 2147483648
    %v1415 = vxor.u32 %v1413, 2147483648
    %v1416 = vmul.f32 %v1414, 1.442695
    %v1417 = vpow.pop %v1416
    %v1418 = vmul.f32 %v1415, 1.442695
    %v1419 = vpow.pop %v1418
    %v1420 = vadd.f32 %v1417, 1.0
    %v1421 = vadd.f32 %v1419, 1.0
    %v1422 = vrcp.pop %v1420
    %v1423 = vmul.f32 1.0, %v1422
    %v1424 = vrcp.pop %v1421
    %v1425 = vmul.f32 1.0, %v1424
    %v1426 = vmul.f32 %v1423, %v1409
    %v1427 = vadd.f32 %v448, %v1426
    %v1428 = vtanh.pop %v1427
    %v1429 = vsub.f32 1.0, %v1425
    %v1430 = vmul.f32 %v1429, %v1428
    %v1431 = vmul.f32 %v1425, %v1270
    %v1432 = vadd.f32 %v1430, %v1431
    %1433 = vmatprep.subr.mxu0 %v104
    %1434 = vmatpush1.msra.mxu0 %v103
    %1435 = vmatprep.subr.mxu0 %v101
    %1436 = vmatpush1.msra.mxu0 %v100
    %1437 = vmatprep.subr.mxu0 %v98
    %1438 = vmatpush1.msra.mxu0 %v97
    %1439 = vmatprep.subr.mxu0 %v95
    %1440 = vmatpush1.msra.mxu0 %v94
    %1441 = vmatprep.subr.mxu0 %v92
    %1442 = vmatpush1.msra.mxu0 %v91
    %1443 = vmatprep.subr.mxu0 %v89
    %1444 = vmatpush1.msra.mxu0 %v88
    %1445 = vmatprep.subr.mxu0 %v86
    %1446 = vmatpush1.msra.mxu0 %v85
    %1447 = vmatprep.subr.mxu0 %v83
    %1448 = vmatpush1.msra.mxu0 %v82
    %1449 = vmatprep.subr.mxu0 %v80
    %1450 = vmatpush1.msra.mxu0 %v79
    %1451 = vmatprep.subr.mxu0 %v77
    %1452 = vmatpush1.msra.mxu0 %v76
    %1453 = vmatprep.subr.mxu0 %v74
    %1454 = vmatpush1.msra.mxu0 %v73
    %1455 = vmatprep.subr.mxu0 %v71
    %1456 = vmatpush1.msra.mxu0 %v70
    %1457 = vmatprep.subr.mxu0 %v68
    %1458 = vmatpush1.msra.mxu0 %v67
    %1459 = vmatprep.subr.mxu0 %v65
    %1460 = vmatpush1.msra.mxu0 %v64
    %1461 = vmatprep.subr.mxu0 %v62
    %1462 = vmatpush1.msra.mxu0 %v61
    %1463 = vmatprep.subr.mxu0 %v59
    %1464 = vmatpush1.msra.mxu0 %v58
    %1465 = vmatprep.subr.mxu0 0.0
    %1466 = vmatpush2.msra.mxu0 0.0
    %1467 = vmatprep.subr.mxu0 0.0
    %1468 = vmatpush2.msra.mxu0 0.0
    %1469 = vmatprep.subr.mxu0 0.0
    %1470 = vmatpush2.msra.mxu0 0.0
    %1471 = vmatprep.subr.mxu0 0.0
    %1472 = vmatpush2.msra.mxu0 0.0
    %1473 = vmatprep.subr.mxu0 0.0
    %1474 = vmatpush2.msra.mxu0 0.0
    %1475 = vmatprep.subr.mxu0 0.0
    %1476 = vmatpush2.msra.mxu0 0.0
    %1477 = vmatprep.subr.mxu0 0.0
    %1478 = vmatpush2.msra.mxu0 0.0
    %1479 = vmatprep.subr.mxu0 0.0
    %1480 = vmatpush2.msra.mxu0 0.0
    %1481 = vmatprep.subr.mxu0 0.0
    %1482 = vmatpush2.msra.mxu0 0.0
    %1483 = vmatprep.subr.mxu0 0.0
    %1484 = vmatpush2.msra.mxu0 0.0
    %1485 = vmatprep.subr.mxu0 0.0
    %1486 = vmatpush2.msra.mxu0 0.0
    %1487 = vmatprep.subr.mxu0 0.0
    %1488 = vmatpush2.msra.mxu0 0.0
    %1489 = vmatprep.subr.mxu0 0.0
    %1490 = vmatpush2.msra.mxu0 0.0
    %1491 = vmatprep.subr.mxu0 0.0
    %1492 = vmatpush2.msra.mxu0 0.0
    %1493 = vmatprep.subr.mxu0 0.0
    %1494 = vmatpush2.msra.mxu0 0.0
    %1495 = vmatprep.subr.mxu0 0.0
    %1496 = vmatpush2.msra.mxu0 0.0
    %1497 = vmatprep.mubr.f32.mxu0 0.0
    %1498 = vmatmul.mubr.f32.gmra.mxu0 %v1432
    %v1499 = vpop.f32.mrf.mxu0
    %v1500 = vadd.f32 %v161, %v1499
    %v1501 = vpop.f32.mrf.mxu0
    %v1502 = vadd.f32 %v165, %v1501
    %1503 = vdwg.mxu0
    %1504 = vmatprep.subr.mxu0 0.0
    %1505 = vmatpush1.msra.mxu0 %v105
    %1506 = vmatprep.subr.mxu0 0.0
    %1507 = vmatpush1.msra.mxu0 %v102
    %1508 = vmatprep.subr.mxu0 0.0
    %1509 = vmatpush1.msra.mxu0 %v99
    %1510 = vmatprep.subr.mxu0 0.0
    %1511 = vmatpush1.msra.mxu0 %v96
    %1512 = vmatprep.subr.mxu0 0.0
    %1513 = vmatpush1.msra.mxu0 %v93
    %1514 = vmatprep.subr.mxu0 0.0
    %1515 = vmatpush1.msra.mxu0 %v90
    %1516 = vmatprep.subr.mxu0 0.0
    %1517 = vmatpush1.msra.mxu0 %v87
    %1518 = vmatprep.subr.mxu0 0.0
    %1519 = vmatpush1.msra.mxu0 %v84
    %1520 = vmatprep.subr.mxu0 0.0
    %1521 = vmatpush1.msra.mxu0 %v81
    %1522 = vmatprep.subr.mxu0 0.0
    %1523 = vmatpush1.msra.mxu0 %v78
    %1524 = vmatprep.subr.mxu0 0.0
    %1525 = vmatpush1.msra.mxu0 %v75
    %1526 = vmatprep.subr.mxu0 0.0
    %1527 = vmatpush1.msra.mxu0 %v72
    %1528 = vmatprep.subr.mxu0 0.0
    %1529 = vmatpush1.msra.mxu0 %v69
    %1530 = vmatprep.subr.mxu0 0.0
    %1531 = vmatpush1.msra.mxu0 %v66
    %1532 = vmatprep.subr.mxu0 0.0
    %1533 = vmatpush1.msra.mxu0 %v63
    %1534 = vmatprep.subr.mxu0 0.0
    %1535 = vmatpush1.msra.mxu0 %v60
    %1536 = vmatprep.subr.mxu0 0.0
    %1537 = vmatpush2.msra.mxu0 0.0
    %1538 = vmatprep.subr.mxu0 0.0
    %1539 = vmatpush2.msra.mxu0 0.0
    %1540 = vmatprep.subr.mxu0 0.0
    %1541 = vmatpush2.msra.mxu0 0.0
    %1542 = vmatprep.subr.mxu0 0.0
    %1543 = vmatpush2.msra.mxu0 0.0
    %1544 = vmatprep.subr.mxu0 0.0
    %1545 = vmatpush2.msra.mxu0 0.0
    %1546 = vmatprep.subr.mxu0 0.0
    %1547 = vmatpush2.msra.mxu0 0.0
    %1548 = vmatprep.subr.mxu0 0.0
    %1549 = vmatpush2.msra.mxu0 0.0
    %1550 = vmatprep.subr.mxu0 0.0
    %1551 = vmatpush2.msra.mxu0 0.0
    %1552 = vmatprep.subr.mxu0 0.0
    %1553 = vmatpush2.msra.mxu0 0.0
    %1554 = vmatprep.subr.mxu0 0.0
    %1555 = vmatpush2.msra.mxu0 0.0
    %1556 = vmatprep.subr.mxu0 0.0
    %1557 = vmatpush2.msra.mxu0 0.0
    %1558 = vmatprep.subr.mxu0 0.0
    %1559 = vmatpush2.msra.mxu0 0.0
    %1560 = vmatprep.subr.mxu0 0.0
    %1561 = vmatpush2.msra.mxu0 0.0
    %1562 = vmatprep.subr.mxu0 0.0
    %1563 = vmatpush2.msra.mxu0 0.0
    %1564 = vmatprep.subr.mxu0 0.0
    %1565 = vmatpush2.msra.mxu0 0.0
    %1566 = vmatprep.subr.mxu0 0.0
    %1567 = vmatpush2.msra.mxu0 0.0
    %1568 = vmatprep.mubr.f32.mxu0 0.0
    %1569 = vmatmul.mubr.f32.gmra.mxu0 %v1432
    %v1570 = vpop.f32.mrf.mxu0
    %v1571 = vadd.f32 %v169, %v1570
    %v1572 = vpop.f32.mrf.mxu0
    %1573 = vdwg.mxu0
    %v1574 = vadd.f32 %v346, %v1500
    %v1575 = vadd.f32 %v348, %v1502
    %v1576 = vxor.u32 %v1574, 2147483648
    %v1577 = vxor.u32 %v1575, 2147483648
    %v1578 = vmul.f32 %v1576, 1.442695
    %v1579 = vpow.pop %v1578
    %v1580 = vmul.f32 %v1577, 1.442695
    %v1581 = vpow.pop %v1580
    %v1582 = vadd.f32 %v1579, 1.0
    %v1583 = vadd.f32 %v1581, 1.0
    %v1584 = vrcp.pop %v1582
    %v1585 = vmul.f32 1.0, %v1584
    %v1586 = vrcp.pop %v1583
    %v1587 = vmul.f32 1.0, %v1586
    %v1588 = vmul.f32 %v1585, %v1571
    %v1589 = vadd.f32 %v453, %v1588
    %v1590 = vtanh.pop %v1589
    %v1591 = vsub.f32 1.0, %v1587
    %v1592 = vmul.f32 %v1591, %v1590
    %v1593 = vmul.f32 %v1587, %v1432
    %v1594 = vadd.f32 %v1592, %v1593
    %1595 = vmatprep.subr.mxu0 %v104
    %1596 = vmatpush1.msra.mxu0 %v103
    %1597 = vmatprep.subr.mxu0 %v101
    %1598 = vmatpush1.msra.mxu0 %v100
    %1599 = vmatprep.subr.mxu0 %v98
    %1600 = vmatpush1.msra.mxu0 %v97
    %1601 = vmatprep.subr.mxu0 %v95
    %1602 = vmatpush1.msra.mxu0 %v94
    %1603 = vmatprep.subr.mxu0 %v92
    %1604 = vmatpush1.msra.mxu0 %v91
    %1605 = vmatprep.subr.mxu0 %v89
    %1606 = vmatpush1.msra.mxu0 %v88
    %1607 = vmatprep.subr.mxu0 %v86
    %1608 = vmatpush1.msra.mxu0 %v85
    %1609 = vmatprep.subr.mxu0 %v83
    %1610 = vmatpush1.msra.mxu0 %v82
    %1611 = vmatprep.subr.mxu0 %v80
    %1612 = vmatpush1.msra.mxu0 %v79
    %1613 = vmatprep.subr.mxu0 %v77
    %1614 = vmatpush1.msra.mxu0 %v76
    %1615 = vmatprep.subr.mxu0 %v74
    %1616 = vmatpush1.msra.mxu0 %v73
    %1617 = vmatprep.subr.mxu0 %v71
    %1618 = vmatpush1.msra.mxu0 %v70
    %1619 = vmatprep.subr.mxu0 %v68
    %1620 = vmatpush1.msra.mxu0 %v67
    %1621 = vmatprep.subr.mxu0 %v65
    %1622 = vmatpush1.msra.mxu0 %v64
    %1623 = vmatprep.subr.mxu0 %v62
    %1624 = vmatpush1.msra.mxu0 %v61
    %1625 = vmatprep.subr.mxu0 %v59
    %1626 = vmatpush1.msra.mxu0 %v58
    %1627 = vmatprep.subr.mxu0 0.0
    %1628 = vmatpush2.msra.mxu0 0.0
    %1629 = vmatprep.subr.mxu0 0.0
    %1630 = vmatpush2.msra.mxu0 0.0
    %1631 = vmatprep.subr.mxu0 0.0
    %1632 = vmatpush2.msra.mxu0 0.0
    %1633 = vmatprep.subr.mxu0 0.0
    %1634 = vmatpush2.msra.mxu0 0.0
    %1635 = vmatprep.subr.mxu0 0.0
    %1636 = vmatpush2.msra.mxu0 0.0
    %1637 = vmatprep.subr.mxu0 0.0
    %1638 = vmatpush2.msra.mxu0 0.0
    %1639 = vmatprep.subr.mxu0 0.0
    %1640 = vmatpush2.msra.mxu0 0.0
    %1641 = vmatprep.subr.mxu0 0.0
    %1642 = vmatpush2.msra.mxu0 0.0
    %1643 = vmatprep.subr.mxu0 0.0
    %1644 = vmatpush2.msra.mxu0 0.0
    %1645 = vmatprep.subr.mxu0 0.0
    %1646 = vmatpush2.msra.mxu0 0.0
    %1647 = vmatprep.subr.mxu0 0.0
    %1648 = vmatpush2.msra.mxu0 0.0
    %1649 = vmatprep.subr.mxu0 0.0
    %1650 = vmatpush2.msra.mxu0 0.0
    %1651 = vmatprep.subr.mxu0 0.0
    %1652 = vmatpush2.msra.mxu0 0.0
    %1653 = vmatprep.subr.mxu0 0.0
    %1654 = vmatpush2.msra.mxu0 0.0
    %1655 = vmatprep.subr.mxu0 0.0
    %1656 = vmatpush2.msra.mxu0 0.0
    %1657 = vmatprep.subr.mxu0 0.0
    %1658 = vmatpush2.msra.mxu0 0.0
    %1659 = vmatprep.mubr.f32.mxu0 0.0
    %1660 = vmatmul.mubr.f32.gmra.mxu0 %v1594
    %v1661 = vpop.f32.mrf.mxu0
    %v1662 = vadd.f32 %v161, %v1661
    %v1663 = vpop.f32.mrf.mxu0
    %v1664 = vadd.f32 %v165, %v1663
    %1665 = vdwg.mxu0
    %1666 = vmatprep.subr.mxu0 0.0
    %1667 = vmatpush1.msra.mxu0 %v105
    %1668 = vmatprep.subr.mxu0 0.0
    %1669 = vmatpush1.msra.mxu0 %v102
    %1670 = vmatprep.subr.mxu0 0.0
    %1671 = vmatpush1.msra.mxu0 %v99
    %1672 = vmatprep.subr.mxu0 0.0
    %1673 = vmatpush1.msra.mxu0 %v96
    %1674 = vmatprep.subr.mxu0 0.0
    %1675 = vmatpush1.msra.mxu0 %v93
    %1676 = vmatprep.subr.mxu0 0.0
    %1677 = vmatpush1.msra.mxu0 %v90
    %1678 = vmatprep.subr.mxu0 0.0
    %1679 = vmatpush1.msra.mxu0 %v87
    %1680 = vmatprep.subr.mxu0 0.0
    %1681 = vmatpush1.msra.mxu0 %v84
    %1682 = vmatprep.subr.mxu0 0.0
    %1683 = vmatpush1.msra.mxu0 %v81
    %1684 = vmatprep.subr.mxu0 0.0
    %1685 = vmatpush1.msra.mxu0 %v78
    %1686 = vmatprep.subr.mxu0 0.0
    %1687 = vmatpush1.msra.mxu0 %v75
    %1688 = vmatprep.subr.mxu0 0.0
    %1689 = vmatpush1.msra.mxu0 %v72
    %1690 = vmatprep.subr.mxu0 0.0
    %1691 = vmatpush1.msra.mxu0 %v69
    %1692 = vmatprep.subr.mxu0 0.0
    %1693 = vmatpush1.msra.mxu0 %v66
    %1694 = vmatprep.subr.mxu0 0.0
    %1695 = vmatpush1.msra.mxu0 %v63
    %1696 = vmatprep.subr.mxu0 0.0
    %1697 = vmatpush1.msra.mxu0 %v60
    %1698 = vmatprep.subr.mxu0 0.0
    %1699 = vmatpush2.msra.mxu0 0.0
    %1700 = vmatprep.subr.mxu0 0.0
    %1701 = vmatpush2.msra.mxu0 0.0
    %1702 = vmatprep.subr.mxu0 0.0
    %1703 = vmatpush2.msra.mxu0 0.0
    %1704 = vmatprep.subr.mxu0 0.0
    %1705 = vmatpush2.msra.mxu0 0.0
    %1706 = vmatprep.subr.mxu0 0.0
    %1707 = vmatpush2.msra.mxu0 0.0
    %1708 = vmatprep.subr.mxu0 0.0
    %1709 = vmatpush2.msra.mxu0 0.0
    %1710 = vmatprep.subr.mxu0 0.0
    %1711 = vmatpush2.msra.mxu0 0.0
    %1712 = vmatprep.subr.mxu0 0.0
    %1713 = vmatpush2.msra.mxu0 0.0
    %1714 = vmatprep.subr.mxu0 0.0
    %1715 = vmatpush2.msra.mxu0 0.0
    %1716 = vmatprep.subr.mxu0 0.0
    %1717 = vmatpush2.msra.mxu0 0.0
    %1718 = vmatprep.subr.mxu0 0.0
    %1719 = vmatpush2.msra.mxu0 0.0
    %1720 = vmatprep.subr.mxu0 0.0
    %1721 = vmatpush2.msra.mxu0 0.0
    %1722 = vmatprep.subr.mxu0 0.0
    %1723 = vmatpush2.msra.mxu0 0.0
    %1724 = vmatprep.subr.mxu0 0.0
    %1725 = vmatpush2.msra.mxu0 0.0
    %1726 = vmatprep.subr.mxu0 0.0
    %1727 = vmatpush2.msra.mxu0 0.0
    %1728 = vmatprep.subr.mxu0 0.0
    %1729 = vmatpush2.msra.mxu0 0.0
    %1730 = vmatprep.mubr.f32.mxu0 0.0
    %1731 = vmatmul.mubr.f32.gmra.mxu0 %v1594
    %v1732 = vpop.f32.mrf.mxu0
    %v1733 = vadd.f32 %v169, %v1732
    %v1734 = vpop.f32.mrf.mxu0
    %1735 = vdwg.mxu0
    %v1736 = vadd.f32 %v352, %v1662
    %v1737 = vadd.f32 %v354, %v1664
    %v1738 = vxor.u32 %v1736, 2147483648
    %v1739 = vxor.u32 %v1737, 2147483648
    %v1740 = vmul.f32 %v1738, 1.442695
    %v1741 = vpow.pop %v1740
    %v1742 = vmul.f32 %v1739, 1.442695
    %v1743 = vpow.pop %v1742
    %v1744 = vadd.f32 %v1741, 1.0
    %v1745 = vadd.f32 %v1743, 1.0
    %v1746 = vrcp.pop %v1744
    %v1747 = vmul.f32 1.0, %v1746
    %v1748 = vrcp.pop %v1745
    %v1749 = vmul.f32 1.0, %v1748
    %v1750 = vmul.f32 %v1747, %v1733
    %v1751 = vadd.f32 %v458, %v1750
    %v1752 = vtanh.pop %v1751
    %v1753 = vsub.f32 1.0, %v1749
    %v1754 = vmul.f32 %v1753, %v1752
    %v1755 = vmul.f32 %v1749, %v1594
    %v1756 = vadd.f32 %v1754, %v1755
    %v1758 = vlaneseq
    %v1759 = vshrl.u32 %v1758, 7
    %v1760 = vsub.s32 0, %v1759
    %v1761 = vrot.slane %v174, %v1760
    %v1762 = vlaneseq
    %v1763 = vshrl.u32 %v1762, 7
    %v1764 = vsub.s32 1, %v1763
    %v1765 = vrot.slane %v174, %v1764
    %v1766 = vlaneseq
    %v1767 = vshrl.u32 %v1766, 7
    %v1768 = vsub.s32 2, %v1767
    %v1769 = vrot.slane %v174, %v1768
    %1773 = vmatprep.subr.mxu0 0.0
    %1774 = vmatpush1.msra.mxu0 0.0
    %1775 = vmatprep.subr.mxu0 0.0
    %1776 = vmatpush1.msra.mxu0 0.0
    %1777 = vmatprep.subr.mxu0 0.0
    %1778 = vmatpush1.msra.mxu0 0.0
    %1779 = vmatprep.subr.mxu0 0.0
    %1780 = vmatpush1.msra.mxu0 0.0
    %1781 = vmatprep.subr.mxu0 0.0
    %1782 = vmatpush1.msra.mxu0 0.0
    %1783 = vmatprep.subr.mxu0 0.0
    %1784 = vmatpush1.msra.mxu0 0.0
    %1785 = vmatprep.subr.mxu0 0.0
    %1786 = vmatpush1.msra.mxu0 0.0
    %1787 = vmatprep.subr.mxu0 0.0
    %1788 = vmatpush1.msra.mxu0 0.0
    %1789 = vmatprep.subr.mxu0 0.0
    %1790 = vmatpush1.msra.mxu0 0.0
    %1791 = vmatprep.subr.mxu0 0.0
    %1792 = vmatpush1.msra.mxu0 0.0
    %1793 = vmatprep.subr.mxu0 0.0
    %1794 = vmatpush1.msra.mxu0 0.0
    %1795 = vmatprep.subr.mxu0 0.0
    %1796 = vmatpush1.msra.mxu0 0.0
    %1797 = vmatprep.subr.mxu0 0.0
    %1798 = vmatpush1.msra.mxu0 0.0
    %1799 = vmatprep.subr.mxu0 0.0
    %1800 = vmatpush1.msra.mxu0 0.0
    %1801 = vmatprep.subr.mxu0 %v56
    %1802 = vmatpush1.msra.mxu0 %v55
    %1803 = vmatprep.subr.mxu0 %v53
    %1804 = vmatpush1.msra.mxu0 %v52
    %1805 = vmatprep.subr.mxu0 0.0
    %1806 = vmatpush2.msra.mxu0 0.0
    %1807 = vmatprep.subr.mxu0 0.0
    %1808 = vmatpush2.msra.mxu0 0.0
    %1809 = vmatprep.subr.mxu0 0.0
    %1810 = vmatpush2.msra.mxu0 0.0
    %1811 = vmatprep.subr.mxu0 0.0
    %1812 = vmatpush2.msra.mxu0 0.0
    %1813 = vmatprep.subr.mxu0 0.0
    %1814 = vmatpush2.msra.mxu0 0.0
    %1815 = vmatprep.subr.mxu0 0.0
    %1816 = vmatpush2.msra.mxu0 0.0
    %1817 = vmatprep.subr.mxu0 0.0
    %1818 = vmatpush2.msra.mxu0 0.0
    %1819 = vmatprep.subr.mxu0 0.0
    %1820 = vmatpush2.msra.mxu0 0.0
    %1821 = vmatprep.subr.mxu0 0.0
    %1822 = vmatpush2.msra.mxu0 0.0
    %1823 = vmatprep.subr.mxu0 0.0
    %1824 = vmatpush2.msra.mxu0 0.0
    %1825 = vmatprep.subr.mxu0 0.0
    %1826 = vmatpush2.msra.mxu0 0.0
    %1827 = vmatprep.subr.mxu0 0.0
    %1828 = vmatpush2.msra.mxu0 0.0
    %1829 = vmatprep.subr.mxu0 0.0
    %1830 = vmatpush2.msra.mxu0 0.0
    %1831 = vmatprep.subr.mxu0 0.0
    %1832 = vmatpush2.msra.mxu0 0.0
    %1833 = vmatprep.subr.mxu0 0.0
    %1834 = vmatpush2.msra.mxu0 0.0
    %1835 = vmatprep.subr.mxu0 0.0
    %1836 = vmatpush2.msra.mxu0 0.0
    %1837 = vmatprep.mubr.f32.mxu0 0.0
    %1838 = vmatmul.mubr.f32.gmra.mxu0 %v241
    %v1839 = vpop.f32.mrf.mxu0
    %v1840 = vadd.f32 %v1761, %v1839
    %v1841 = vpop.f32.mrf.mxu0
    %v1842 = vadd.f32 %v1765, %v1841
    %1843 = vdwg.mxu0
    %1844 = vmatprep.subr.mxu0 0.0
    %1845 = vmatpush1.msra.mxu0 0.0
    %1846 = vmatprep.subr.mxu0 0.0
    %1847 = vmatpush1.msra.mxu0 0.0
    %1848 = vmatprep.subr.mxu0 0.0
    %1849 = vmatpush1.msra.mxu0 0.0
    %1850 = vmatprep.subr.mxu0 0.0
    %1851 = vmatpush1.msra.mxu0 0.0
    %1852 = vmatprep.subr.mxu0 0.0
    %1853 = vmatpush1.msra.mxu0 0.0
    %1854 = vmatprep.subr.mxu0 0.0
    %1855 = vmatpush1.msra.mxu0 0.0
    %1856 = vmatprep.subr.mxu0 0.0
    %1857 = vmatpush1.msra.mxu0 0.0
    %1858 = vmatprep.subr.mxu0 0.0
    %1859 = vmatpush1.msra.mxu0 0.0
    %1860 = vmatprep.subr.mxu0 0.0
    %1861 = vmatpush1.msra.mxu0 0.0
    %1862 = vmatprep.subr.mxu0 0.0
    %1863 = vmatpush1.msra.mxu0 0.0
    %1864 = vmatprep.subr.mxu0 0.0
    %1865 = vmatpush1.msra.mxu0 0.0
    %1866 = vmatprep.subr.mxu0 0.0
    %1867 = vmatpush1.msra.mxu0 0.0
    %1868 = vmatprep.subr.mxu0 0.0
    %1869 = vmatpush1.msra.mxu0 0.0
    %1870 = vmatprep.subr.mxu0 0.0
    %1871 = vmatpush1.msra.mxu0 0.0
    %1872 = vmatprep.subr.mxu0 0.0
    %1873 = vmatpush1.msra.mxu0 %v57
    %1874 = vmatprep.subr.mxu0 0.0
    %1875 = vmatpush1.msra.mxu0 %v54
    %1876 = vmatprep.subr.mxu0 0.0
    %1877 = vmatpush2.msra.mxu0 0.0
    %1878 = vmatprep.subr.mxu0 0.0
    %1879 = vmatpush2.msra.mxu0 0.0
    %1880 = vmatprep.subr.mxu0 0.0
    %1881 = vmatpush2.msra.mxu0 0.0
    %1882 = vmatprep.subr.mxu0 0.0
    %1883 = vmatpush2.msra.mxu0 0.0
    %1884 = vmatprep.subr.mxu0 0.0
    %1885 = vmatpush2.msra.mxu0 0.0
    %1886 = vmatprep.subr.mxu0 0.0
    %1887 = vmatpush2.msra.mxu0 0.0
    %1888 = vmatprep.subr.mxu0 0.0
    %1889 = vmatpush2.msra.mxu0 0.0
    %1890 = vmatprep.subr.mxu0 0.0
    %1891 = vmatpush2.msra.mxu0 0.0
    %1892 = vmatprep.subr.mxu0 0.0
    %1893 = vmatpush2.msra.mxu0 0.0
    %1894 = vmatprep.subr.mxu0 0.0
    %1895 = vmatpush2.msra.mxu0 0.0
    %1896 = vmatprep.subr.mxu0 0.0
    %1897 = vmatpush2.msra.mxu0 0.0
    %1898 = vmatprep.subr.mxu0 0.0
    %1899 = vmatpush2.msra.mxu0 0.0
    %1900 = vmatprep.subr.mxu0 0.0
    %1901 = vmatpush2.msra.mxu0 0.0
    %1902 = vmatprep.subr.mxu0 0.0
    %1903 = vmatpush2.msra.mxu0 0.0
    %1904 = vmatprep.subr.mxu0 0.0
    %1905 = vmatpush2.msra.mxu0 0.0
    %1906 = vmatprep.subr.mxu0 0.0
    %1907 = vmatpush2.msra.mxu0 0.0
    %1908 = vmatprep.mubr.f32.mxu0 0.0
    %1909 = vmatmul.mubr.f32.gmra.mxu0 %v241
    %v1910 = vpop.f32.mrf.mxu0
    %v1911 = vadd.f32 %v1769, %v1910
    %v1912 = vpop.f32.mrf.mxu0
    %1913 = vdwg.mxu0
    %1914 = vmatprep.subr.mxu0 %v152
    %1915 = vmatpush1.msra.mxu0 %v151
    %1916 = vmatprep.subr.mxu0 %v149
    %1917 = vmatpush1.msra.mxu0 %v148
    %1918 = vmatprep.subr.mxu0 %v146
    %1919 = vmatpush1.msra.mxu0 %v145
    %1920 = vmatprep.subr.mxu0 %v143
    %1921 = vmatpush1.msra.mxu0 %v142
    %1922 = vmatprep.subr.mxu0 %v140
    %1923 = vmatpush1.msra.mxu0 %v139
    %1924 = vmatprep.subr.mxu0 %v137
    %1925 = vmatpush1.msra.mxu0 %v136
    %1926 = vmatprep.subr.mxu0 %v134
    %1927 = vmatpush1.msra.mxu0 %v133
    %1928 = vmatprep.subr.mxu0 %v131
    %1929 = vmatpush1.msra.mxu0 %v130
    %1930 = vmatprep.subr.mxu0 %v128
    %1931 = vmatpush1.msra.mxu0 %v127
    %1932 = vmatprep.subr.mxu0 %v125
    %1933 = vmatpush1.msra.mxu0 %v124
    %1934 = vmatprep.subr.mxu0 %v122
    %1935 = vmatpush1.msra.mxu0 %v121
    %1936 = vmatprep.subr.mxu0 %v119
    %1937 = vmatpush1.msra.mxu0 %v118
    %1938 = vmatprep.subr.mxu0 %v116
    %1939 = vmatpush1.msra.mxu0 %v115
    %1940 = vmatprep.subr.mxu0 %v113
    %1941 = vmatpush1.msra.mxu0 %v112
    %1942 = vmatprep.subr.mxu0 %v110
    %1943 = vmatpush1.msra.mxu0 %v109
    %1944 = vmatprep.subr.mxu0 %v107
    %1945 = vmatpush1.msra.mxu0 %v106
    %1946 = vmatprep.subr.mxu0 0.0
    %1947 = vmatpush2.msra.mxu0 0.0
    %1948 = vmatprep.subr.mxu0 0.0
    %1949 = vmatpush2.msra.mxu0 0.0
    %1950 = vmatprep.subr.mxu0 0.0
    %1951 = vmatpush2.msra.mxu0 0.0
    %1952 = vmatprep.subr.mxu0 0.0
    %1953 = vmatpush2.msra.mxu0 0.0
    %1954 = vmatprep.subr.mxu0 0.0
    %1955 = vmatpush2.msra.mxu0 0.0
    %1956 = vmatprep.subr.mxu0 0.0
    %1957 = vmatpush2.msra.mxu0 0.0
    %1958 = vmatprep.subr.mxu0 0.0
    %1959 = vmatpush2.msra.mxu0 0.0
    %1960 = vmatprep.subr.mxu0 0.0
    %1961 = vmatpush2.msra.mxu0 0.0
    %1962 = vmatprep.subr.mxu0 0.0
    %1963 = vmatpush2.msra.mxu0 0.0
    %1964 = vmatprep.subr.mxu0 0.0
    %1965 = vmatpush2.msra.mxu0 0.0
    %1966 = vmatprep.subr.mxu0 0.0
    %1967 = vmatpush2.msra.mxu0 0.0
    %1968 = vmatprep.subr.mxu0 0.0
    %1969 = vmatpush2.msra.mxu0 0.0
    %1970 = vmatprep.subr.mxu0 0.0
    %1971 = vmatpush2.msra.mxu0 0.0
    %1972 = vmatprep.subr.mxu0 0.0
    %1973 = vmatpush2.msra.mxu0 0.0
    %1974 = vmatprep.subr.mxu0 0.0
    %1975 = vmatpush2.msra.mxu0 0.0
    %1976 = vmatprep.subr.mxu0 0.0
    %1977 = vmatpush2.msra.mxu0 0.0
    %1978 = vmatprep.mubr.f32.mxu0 0.0
    %1979 = vmatmul.mubr.f32.gmra.mxu0 0.0
    %v1980 = vpop.f32.mrf.mxu0
    %v1981 = vadd.f32 %v181, %v1980
    %v1982 = vpop.f32.mrf.mxu0
    %v1983 = vadd.f32 %v185, %v1982
    %1984 = vdwg.mxu0
    %1985 = vmatprep.subr.mxu0 0.0
    %1986 = vmatpush1.msra.mxu0 %v153
    %1987 = vmatprep.subr.mxu0 0.0
    %1988 = vmatpush1.msra.mxu0 %v150
    %1989 = vmatprep.subr.mxu0 0.0
    %1990 = vmatpush1.msra.mxu0 %v147
    %1991 = vmatprep.subr.mxu0 0.0
    %1992 = vmatpush1.msra.mxu0 %v144
    %1993 = vmatprep.subr.mxu0 0.0
    %1994 = vmatpush1.msra.mxu0 %v141
    %1995 = vmatprep.subr.mxu0 0.0
    %1996 = vmatpush1.msra.mxu0 %v138
    %1997 = vmatprep.subr.mxu0 0.0
    %1998 = vmatpush1.msra.mxu0 %v135
    %1999 = vmatprep.subr.mxu0 0.0
    %2000 = vmatpush1.msra.mxu0 %v132
    %2001 = vmatprep.subr.mxu0 0.0
    %2002 = vmatpush1.msra.mxu0 %v129
    %2003 = vmatprep.subr.mxu0 0.0
    %2004 = vmatpush1.msra.mxu0 %v126
    %2005 = vmatprep.subr.mxu0 0.0
    %2006 = vmatpush1.msra.mxu0 %v123
    %2007 = vmatprep.subr.mxu0 0.0
    %2008 = vmatpush1.msra.mxu0 %v120
    %2009 = vmatprep.subr.mxu0 0.0
    %2010 = vmatpush1.msra.mxu0 %v117
    %2011 = vmatprep.subr.mxu0 0.0
    %2012 = vmatpush1.msra.mxu0 %v114
    %2013 = vmatprep.subr.mxu0 0.0
    %2014 = vmatpush1.msra.mxu0 %v111
    %2015 = vmatprep.subr.mxu0 0.0
    %2016 = vmatpush1.msra.mxu0 %v108
    %2017 = vmatprep.subr.mxu0 0.0
    %2018 = vmatpush2.msra.mxu0 0.0
    %2019 = vmatprep.subr.mxu0 0.0
    %2020 = vmatpush2.msra.mxu0 0.0
    %2021 = vmatprep.subr.mxu0 0.0
    %2022 = vmatpush2.msra.mxu0 0.0
    %2023 = vmatprep.subr.mxu0 0.0
    %2024 = vmatpush2.msra.mxu0 0.0
    %2025 = vmatprep.subr.mxu0 0.0
    %2026 = vmatpush2.msra.mxu0 0.0
    %2027 = vmatprep.subr.mxu0 0.0
    %2028 = vmatpush2.msra.mxu0 0.0
    %2029 = vmatprep.subr.mxu0 0.0
    %2030 = vmatpush2.msra.mxu0 0.0
    %2031 = vmatprep.subr.mxu0 0.0
    %2032 = vmatpush2.msra.mxu0 0.0
    %2033 = vmatprep.subr.mxu0 0.0
    %2034 = vmatpush2.msra.mxu0 0.0
    %2035 = vmatprep.subr.mxu0 0.0
    %2036 = vmatpush2.msra.mxu0 0.0
    %2037 = vmatprep.subr.mxu0 0.0
    %2038 = vmatpush2.msra.mxu0 0.0
    %2039 = vmatprep.subr.mxu0 0.0
    %2040 = vmatpush2.msra.mxu0 0.0
    %2041 = vmatprep.subr.mxu0 0.0
    %2042 = vmatpush2.msra.mxu0 0.0
    %2043 = vmatprep.subr.mxu0 0.0
    %2044 = vmatpush2.msra.mxu0 0.0
    %2045 = vmatprep.subr.mxu0 0.0
    %2046 = vmatpush2.msra.mxu0 0.0
    %2047 = vmatprep.subr.mxu0 0.0
    %2048 = vmatpush2.msra.mxu0 0.0
    %2049 = vmatprep.mubr.f32.mxu0 0.0
    %2050 = vmatmul.mubr.f32.gmra.mxu0 0.0
    %v2051 = vpop.f32.mrf.mxu0
    %v2052 = vadd.f32 %v189, %v2051
    %v2053 = vpop.f32.mrf.mxu0
    %2054 = vdwg.mxu0
    %v2055 = vadd.f32 %v1840, %v1981
    %v2056 = vadd.f32 %v1842, %v1983
    %v2057 = vxor.u32 %v2055, 2147483648
    %v2058 = vxor.u32 %v2056, 2147483648
    %v2059 = vmul.f32 %v2057, 1.442695
    %v2060 = vpow.pop %v2059
    %v2061 = vmul.f32 %v2058, 1.442695
    %v2062 = vpow.pop %v2061
    %v2063 = vadd.f32 %v2060, 1.0
    %v2064 = vadd.f32 %v2062, 1.0
    %v2065 = vrcp.pop %v2063
    %v2066 = vmul.f32 1.0, %v2065
    %v2067 = vrcp.pop %v2064
    %v2068 = vmul.f32 1.0, %v2067
    %v2069 = vmul.f32 %v2066, %v2052
    %v2070 = vadd.f32 %v1911, %v2069
    %v2071 = vtanh.pop %v2070
    %v2072 = vsub.f32 1.0, %v2068
    %v2073 = vmul.f32 %v2072, %v2071
    %v2074 = vmul.f32 %v2068, 0.0
    %v2075 = vadd.f32 %v2073, %v2074
    %v2076 = vld [vmem:[#allocation5] sm:$0xff]
    %v2077 = vld [vmem:[#allocation5 + $0x8] sm:$0xff]
    %v2078 = vld [vmem:[#allocation5 + $0x10] sm:$0xff]
    %v2079 = vld [vmem:[#allocation5 + $0x18] sm:$0xff]
    %v2080 = vld [vmem:[#allocation5 + $0x20] sm:$0xff]
    %v2081 = vld [vmem:[#allocation5 + $0x28] sm:$0xff]
    %v2082 = vld [vmem:[#allocation5 + $0x30] sm:$0xff]
    %v2083 = vld [vmem:[#allocation5 + $0x38] sm:$0xff]
    %v2084 = vld [vmem:[#allocation5 + $0x40] sm:$0xff]
    %v2085 = vld [vmem:[#allocation5 + $0x48] sm:$0xff]
    %v2086 = vld [vmem:[#allocation5 + $0x50] sm:$0xff]
    %v2087 = vld [vmem:[#allocation5 + $0x58] sm:$0xff]
    %v2088 = vld [vmem:[#allocation5 + $0x60] sm:$0xff]
    %v2089 = vld [vmem:[#allocation5 + $0x68] sm:$0xff]
    %v2090 = vld [vmem:[#allocation5 + $0x70] sm:$0xff]
    %v2091 = vld [vmem:[#allocation5 + $0x78] sm:$0xff]
    %v2092 = vld [vmem:[#allocation5 + $0x80] sm:$0xff]
    %v2093 = vld [vmem:[#allocation5 + $0x88] sm:$0xff]
    %v2094 = vld [vmem:[#allocation5 + $0x90] sm:$0xff]
    %v2095 = vld [vmem:[#allocation5 + $0x98] sm:$0xff]
    %v2096 = vld [vmem:[#allocation5 + $0xa0] sm:$0xff]
    %v2097 = vld [vmem:[#allocation5 + $0xa8] sm:$0xff]
    %v2098 = vld [vmem:[#allocation5 + $0xb0] sm:$0xff]
    %v2099 = vld [vmem:[#allocation5 + $0xb8] sm:$0xff]
    %v2100 = vld [vmem:[#allocation5 + $0xc0] sm:$0xff]
    %v2101 = vld [vmem:[#allocation5 + $0xc8] sm:$0xff]
    %v2102 = vld [vmem:[#allocation5 + $0xd0] sm:$0xff]
    %v2103 = vld [vmem:[#allocation5 + $0xd8] sm:$0xff]
    %v2104 = vld [vmem:[#allocation5 + $0xe0] sm:$0xff]
    %v2105 = vld [vmem:[#allocation5 + $0xe8] sm:$0xff]
    %v2106 = vld [vmem:[#allocation5 + $0xf0] sm:$0xff]
    %v2107 = vld [vmem:[#allocation5 + $0xf8] sm:$0xff]
    %2108 = vmatprep.subr.mxu0 0.0
    %2109 = vmatpush1.msra.mxu0 %v2091
    %2110 = vmatprep.subr.mxu0 0.0
    %2111 = vmatpush1.msra.mxu0 %v2090
    %2112 = vmatprep.subr.mxu0 0.0
    %2113 = vmatpush1.msra.mxu0 %v2089
    %2114 = vmatprep.subr.mxu0 0.0
    %2115 = vmatpush1.msra.mxu0 %v2088
    %2116 = vmatprep.subr.mxu0 0.0
    %2117 = vmatpush1.msra.mxu0 %v2087
    %2118 = vmatprep.subr.mxu0 0.0
    %2119 = vmatpush1.msra.mxu0 %v2086
    %2120 = vmatprep.subr.mxu0 0.0
    %2121 = vmatpush1.msra.mxu0 %v2085
    %2122 = vmatprep.subr.mxu0 0.0
    %2123 = vmatpush1.msra.mxu0 %v2084
    %2124 = vmatprep.subr.mxu0 0.0
    %2125 = vmatpush1.msra.mxu0 %v2083
    %2126 = vmatprep.subr.mxu0 0.0
    %2127 = vmatpush1.msra.mxu0 %v2082
    %2128 = vmatprep.subr.mxu0 0.0
    %2129 = vmatpush1.msra.mxu0 %v2081
    %2130 = vmatprep.subr.mxu0 0.0
    %2131 = vmatpush1.msra.mxu0 %v2080
    %2132 = vmatprep.subr.mxu0 0.0
    %2133 = vmatpush1.msra.mxu0 %v2079
    %2134 = vmatprep.subr.mxu0 0.0
    %2135 = vmatpush1.msra.mxu0 %v2078
    %2136 = vmatprep.subr.mxu0 0.0
    %2137 = vmatpush1.msra.mxu0 %v2077
    %2138 = vmatprep.subr.mxu0 0.0
    %2139 = vmatpush1.msra.mxu0 %v2076
    %2140 = vmatprep.subr.mxu0 0.0
    %2141 = vmatpush2.msra.mxu0 %v2107
    %2142 = vmatprep.subr.mxu0 0.0
    %2143 = vmatpush2.msra.mxu0 %v2106
    %2144 = vmatprep.subr.mxu0 0.0
    %2145 = vmatpush2.msra.mxu0 %v2105
    %2146 = vmatprep.subr.mxu0 0.0
    %2147 = vmatpush2.msra.mxu0 %v2104
    %2148 = vmatprep.subr.mxu0 0.0
    %2149 = vmatpush2.msra.mxu0 %v2103
    %2150 = vmatprep.subr.mxu0 0.0
    %2151 = vmatpush2.msra.mxu0 %v2102
    %2152 = vmatprep.subr.mxu0 0.0
    %2153 = vmatpush2.msra.mxu0 %v2101
    %2154 = vmatprep.subr.mxu0 0.0
    %2155 = vmatpush2.msra.mxu0 %v2100
    %2156 = vmatprep.subr.mxu0 0.0
    %2157 = vmatpush2.msra.mxu0 %v2099
    %2158 = vmatprep.subr.mxu0 0.0
    %2159 = vmatpush2.msra.mxu0 %v2098
    %2160 = vmatprep.subr.mxu0 0.0
    %2161 = vmatpush2.msra.mxu0 %v2097
    %2162 = vmatprep.subr.mxu0 0.0
    %2163 = vmatpush2.msra.mxu0 %v2096
    %2164 = vmatprep.subr.mxu0 0.0
    %2165 = vmatpush2.msra.mxu0 %v2095
    %2166 = vmatprep.subr.mxu0 0.0
    %2167 = vmatpush2.msra.mxu0 %v2094
    %2168 = vmatprep.subr.mxu0 0.0
    %2169 = vmatpush2.msra.mxu0 %v2093
    %2170 = vmatprep.subr.mxu0 0.0
    %2171 = vmatpush2.msra.mxu0 %v2092
    %2172 = vmatprep.mubr.f32.mxu0 %v2075
    %2173 = vmatmul.mubr.f32.gmra.mxu0 %v1756
    %v2174 = vpop.f32.mrf.mxu0
    %v2175 = vadd.f32 %v193, %v2174
    %v2176 = vpop.f32.mrf.mxu0
    %2177 = vdwg.mxu0
    %2178 = vst [vmem:[#allocation7] sm:$0xff] %v2175
    // Predicated region
    $region26: #{tpu_custom_call.1} parent=1 // pred_check
      _
    $region27: #{tpu_custom_call.1} parent=1 // pred_check_branch
      %2180 = sbr.rel (0) target = $region29
    $region28: #{tpu_custom_call.1} parent=1 // pred_region
      %s2182 = ssub.s32 128, 128
      %2183 = vsyncadd [#allocation4], %s2182
      %s2185 = sshll.u32 [#allocation7], 4
      %s2186 = int_to_ptr.vmem [resolvable:$true] %s2185
      %2188 = dma.vmem_to_hbm [thread:$0]  %s2186, 128, %s4, [#allocation4]
    $region29: #{tpu_custom_call.1} parent=1 // pred_fallthru
      _
    // Predicated region
    $region30: #{tpu_custom_call.1} parent=1 // pred_check
      _
    $region31: #{tpu_custom_call.1} parent=1 // pred_check_branch
      %2190 = sbr.rel (0) target = $region33
    $region32: #{tpu_custom_call.1} parent=1 // pred_region
      %2191 = dma.done [#allocation4], 128
    $region33: #{tpu_custom_call.1} parent=1 // pred_fallthru
      _
    %2192 = vsyncpa [#allocation3], 1
    %2193 = vsyncpa [#allocation6], 1
    %2194 = vsyncpa [#allocation4], 1

</llo_original>
